<compile_context>
chip_gen: v7x
topology: tpu7x:2x2x1
jax: 0.10.0
libtpu: 0.0.40
codegen_flags: <defaults>
</compile_context>

<pallas_src>
import functools

import jax
import jax.numpy as jnp
from jax.experimental import pallas as pl
from jax.experimental.pallas import tpu as pltpu

LANE = 128          # vreg lane width
MIN_GRID_STEPS = 8  # >= 2 TensorCores (v7x) x >= 3-4 in-flight pipeline steps


def _round_up(x, m):
    return (x + m - 1) // m * m


def _silu(x):
    # f32 transcendental chain: exact on all chips (v5e has no bf16 EUP/VPU).
    return x * jax.nn.sigmoid(x)


# ---------------------------------------------------------------------------
# Kernel: one batch tile per grid step, all weights VMEM-resident (constant
# block index).  Activations carry `pack` batch rows per 128-lane row; the
# weights are block-diagonal so the math equals the unpacked network exactly.
# ---------------------------------------------------------------------------
def generator_kernel(
    z_ref, p_ref,
    cw1_ref, cb1_ref, cw2_ref, cb2_ref,
    mw1z_ref, mw1c_ref, mb1_ref,
    mw2_ref, mb2_ref,
    mw3_ref, mb3_ref,
    out_ref,
):
    f32 = jnp.float32
    bf16 = jnp.bfloat16

    def mxu(a, w_ref):
        # bf16 operands, f32 accumulation on the MXU.
        return jnp.dot(a.astype(bf16), w_ref[...], preferred_element_type=f32)

    # ---- condition branch: Linear -> SiLU -> Linear -----------------------
    h = _silu(mxu(p_ref[...], cw1_ref) + cb1_ref[...])        # (TB, k*2Nz) f32
    cond = mxu(h, cw2_ref) + cb2_ref[...]                     # (TB, k*5Nz) f32

    # ---- model branch on concat([z, cond]); concat fused via weight split --
    x = mxu(z_ref[...], mw1z_ref) + mxu(cond, mw1c_ref) + mb1_ref[...]
    x = _silu(x)                                               # (TB, k*H) f32
    x = _silu(mxu(x, mw2_ref) + mb2_ref[...])                  # (TB, k*H) f32
    out = mxu(x, mw3_ref) + mb3_ref[...]                       # (TB, k*D) lane-dense
    out_ref[...] = out.astype(out_ref.dtype)


# ---------------------------------------------------------------------------
# Wrapper
# ---------------------------------------------------------------------------
@functools.partial(
    jax.jit, static_argnames=("pack", "input_dimension", "max_tile_packed"))
def _generator_pallas(z, param, packed_params, *, pack, input_dimension,
                      max_tile_packed):
    (cw1, cb1, cw2, cb2, mw1z, mw1c, mb1, mw2, mb2, mw3, mb3) = packed_params
    B, NZ = z.shape
    P = param.shape[1]
    k = pack
    DP = mw3.shape[1]                    # pack * input_dimension (no padding)

    # --- pack `k` batch rows per lane-row (free, contiguous reshapes) -------
    B_pad = _round_up(B, k)
    if B_pad != B:                       # rare; demo shapes avoid this pad
        z = jnp.pad(z, ((0, B_pad - B), (0, 0)))
        param = jnp.pad(param, ((0, B_pad - B), (0, 0)))
    Bp = B_pad // k
    zp = z.reshape(Bp, k * NZ)
    pp = param.reshape(Bp, k * P)

    # --- batch tile: >= MIN_GRID_STEPS grid steps, 16-row aligned, VMEM-capped
    act_lanes = max(k * NZ, k * P, cw1.shape[1], cw2.shape[1],
                    mw1z.shape[1], mw2.shape[1], mw3.shape[1])
    vmem_act_budget = 8 * 1024 * 1024            # ~4 live f32 activations
    tb_cap = max(16, vmem_act_budget // (act_lanes * 4 * 4))
    tb = min(max_tile_packed, Bp, tb_cap)
    tb = min(tb, max(16, pl.cdiv(Bp, MIN_GRID_STEPS)))
    if tb < Bp:
        tb = max(8, (tb // 16) * 16)             # sublane-aligned partial tile
    Bp_pad = _round_up(Bp, tb)
    if Bp_pad != Bp:
        # Padded packed rows produce garbage that is sliced off below; rows
        # are independent so this is safe.
        zp = jnp.pad(zp, ((0, Bp_pad - Bp), (0, 0)))
        pp = jnp.pad(pp, ((0, Bp_pad - Bp), (0, 0)))

    weights = (cw1, cb1, cw2, cb2, mw1z, mw1c, mb1, mw2, mb2, mw3, mb3)
    in_specs = [
        pl.BlockSpec((tb, k * NZ), lambda i: (i, 0)),   # z: batch-tiled, bf16
        pl.BlockSpec((tb, k * P), lambda i: (i, 0)),    # param: batch-tiled
    ] + [
        # weights / biases: full block, constant index -> stay VMEM-resident
        pl.BlockSpec(w.shape, lambda i: (0, 0))
        for w in weights
    ]
    out_spec = pl.BlockSpec((tb, DP), lambda i: (i, 0))  # lane-dense store

    out = pl.pallas_call(
        generator_kernel,
        out_shape=jax.ShapeDtypeStruct((Bp_pad, DP), jnp.float32),
        grid=(Bp_pad // tb,),
        in_specs=in_specs,
        out_specs=out_spec,
        compiler_params=pltpu.CompilerParams(
            dimension_semantics=("parallel",),
            vmem_limit_bytes=32 * 1024 * 1024,
        ),
    )(zp, pp, *weights)

    # Un-pack: free row-major reshape; the slice is elided when B == B_pad.
    return out.reshape(Bp_pad * k, input_dimension)[:B]


def generator_forward(param, packed_params, key, *, noise_dimension,
                      input_dimension, pack, max_tile_packed=1024):
    """Full Generator.forward: draws z = 2*U(0,1)-1 and runs the Pallas kernel."""
    # TODO(synk): torch.rand's RNG stream cannot be bit-matched from JAX; z is
    # drawn with jax.random (same 2*U(0,1)-1 distribution).  requires_grad on
    # z has no meaning here (forward-only kernel).
    B = param.shape[0]
    z = 2.0 * jax.random.uniform(key, (B, noise_dimension), jnp.float32) - 1.0
    z = z.astype(jnp.bfloat16)      # MXU operand dtype; halves z HBM traffic
    return _generator_pallas(z, param, packed_params, pack=pack,
                             input_dimension=input_dimension,
                             max_tile_packed=max_tile_packed)


# ---------------------------------------------------------------------------
# Parameter construction (PyTorch nn.Linear default init) + batch-in-lane pack
# ---------------------------------------------------------------------------
def _init_linear(key, fan_in, fan_out):
    # PyTorch nn.Linear default init: U(-1/sqrt(fan_in), 1/sqrt(fan_in)).
    kw, kb = jax.random.split(key)
    bound = 1.0 / float(fan_in) ** 0.5
    w = jax.random.uniform(kw, (fan_in, fan_out), jnp.float32, -bound, bound)
    b = jax.random.uniform(kb, (fan_out,), jnp.float32, -bound, bound)
    return w, b


def choose_pack(input_dimension, parameters_dimension, hidden_dimension,
                noise_dimension):
    """How many independent batch rows to pack per 128-lane row (1 = off)."""
    if input_dimension >= LANE:
        return 1
    k = max(1, LANE // input_dimension)
    widest = max(hidden_dimension, 6 * noise_dimension, parameters_dimension,
                 input_dimension)
    while k > 1 and k * widest > 1024:   # keep block-diag weights VMEM-friendly
        k //= 2
    return k


def _block_diag(w, k):
    # k copies of w on the diagonal: one matmul applies w to k packed rows.
    return jnp.kron(jnp.eye(k, dtype=w.dtype), w)


def make_generator_params(key, input_dimension, parameters_dimension,
                          hidden_dimension, noise_dimension, pack):
    """Returns (packed bf16 params for the kernel, unpacked f32 params for ref)."""
    keys = jax.random.split(key, 5)
    nz = noise_dimension
    # condition net
    cw1, cb1 = _init_linear(keys[0], parameters_dimension, 2 * nz)
    cw2, cb2 = _init_linear(keys[1], 2 * nz, 5 * nz)
    # model net
    mw1, mb1 = _init_linear(keys[2], 6 * nz, hidden_dimension)
    mw2, mb2 = _init_linear(keys[3], hidden_dimension, hidden_dimension)
    mw3, mb3 = _init_linear(keys[4], hidden_dimension, input_dimension)
    # concat([z, cond]) @ W1 == z @ W1[:Nz] + cond @ W1[Nz:]
    mw1z, mw1c = mw1[:nz], mw1[nz:]

    unpacked = (cw1, cb1, cw2, cb2, mw1z, mw1c, mb1, mw2, mb2, mw3, mb3)

    k = pack
    bd = lambda w: _block_diag(w, k).astype(jnp.bfloat16)          # MXU operands
    tl = lambda b: jnp.tile(b, k).reshape(1, -1).astype(jnp.float32)  # f32 adds
    packed = (bd(cw1), tl(cb1), bd(cw2), tl(cb2),
              bd(mw1z), bd(mw1c), tl(mb1),
              bd(mw2), tl(mb2), bd(mw3), tl(mb3))
    return packed, unpacked


# ---------------------------------------------------------------------------
# Pure-JAX reference (same bf16-operand / f32-accumulate math, unpacked)
# ---------------------------------------------------------------------------
def generator_reference(z, param, unpacked_params):
    (cw1, cb1, cw2, cb2, mw1z, mw1c, mb1, mw2, mb2, mw3, mb3) = unpacked_params

    def dot(a, w):
        return jnp.dot(a.astype(jnp.bfloat16), w.astype(jnp.bfloat16),
                       preferred_element_type=jnp.float32)

    h = _silu(dot(param, cw1) + cb1)
    cond = dot(h, cw2) + cb2
    x = _silu(dot(z, mw1z) + dot(cond, mw1c) + mb1)
    x = _silu(dot(x, mw2) + mb2)
    return dot(x, mw3) + mb3


if __name__ == "__main__":
    # Small feature dims consistent with the module; B large enough that the
    # packed batch grid has MIN_GRID_STEPS steps (2048 / pack=8 -> 256 packed
    # rows -> 8 tiles of 32 packed rows = 256 real rows each).
    B = 2048
    input_dimension = 16
    parameters_dimension = 4
    hidden_dimension = 32
    noise_dimension = 8

    pack = choose_pack(input_dimension, parameters_dimension,
                       hidden_dimension, noise_dimension)          # -> 8

    root = jax.random.PRNGKey(0)
    k_param, k_noise, k_weights = jax.random.split(root, 3)

    param = jax.random.normal(k_param, (B, parameters_dimension), jnp.float32)
    packed_params, ref_params = make_generator_params(
        k_weights, input_dimension, parameters_dimension,
        hidden_dimension, noise_dimension, pack)

    out = generator_forward(
        param, packed_params, k_noise,
        noise_dimension=noise_dimension,
        input_dimension=input_dimension,
        pack=pack)
    jax.block_until_ready(out)

    # Reference uses the exact same z the wrapper drew (same key, same formula).
    z = 2.0 * jax.random.uniform(k_noise, (B, noise_dimension), jnp.float32) - 1.0
    z = z.astype(jnp.bfloat16)
    ref = generator_reference(z, param, ref_params)

    assert out.shape == (B, input_dimension)
    err = float(jnp.max(jnp.abs(out - ref)))
    assert jnp.allclose(out, ref, atol=2e-3, rtol=2e-3), err

    print("KERNEL_OK")
</pallas_src>

<mosaic_0001>
module attributes {stable_mosaic.version = 11 : i64} {
  func.func @generator_kernel(%arg0: i32, %arg1: memref<32x64xbf16, #tpu.memory_space<vmem>>, %arg2: memref<32x32xf32, #tpu.memory_space<vmem>>, %arg3: memref<32x128xbf16, #tpu.memory_space<vmem>>, %arg4: memref<1x128xf32, #tpu.memory_space<vmem>>, %arg5: memref<128x320xbf16, #tpu.memory_space<vmem>>, %arg6: memref<1x320xf32, #tpu.memory_space<vmem>>, %arg7: memref<64x256xbf16, #tpu.memory_space<vmem>>, %arg8: memref<320x256xbf16, #tpu.memory_space<vmem>>, %arg9: memref<1x256xf32, #tpu.memory_space<vmem>>, %arg10: memref<256x256xbf16, #tpu.memory_space<vmem>>, %arg11: memref<1x256xf32, #tpu.memory_space<vmem>>, %arg12: memref<256x128xbf16, #tpu.memory_space<vmem>>, %arg13: memref<1x128xf32, #tpu.memory_space<vmem>>, %arg14: memref<32x128xf32, #tpu.memory_space<vmem>>) attributes {dimension_semantics = [#tpu.dimension_semantics<parallel>], iteration_bounds = array<i64: 8>, scalar_prefetch = 0 : i64, scratch_operands = 0 : i64, tpu.core_type = #tpu.core_type<tc>, window_params = [{transform_indices = @transform_0, window_bounds = array<i64: 32, 64>}, {transform_indices = @transform_1, window_bounds = array<i64: 32, 32>}, {pipeline_mode = #tpu.pipeline_mode<synchronous>, transform_indices = @transform_2, window_bounds = array<i64: 32, 128>}, {pipeline_mode = #tpu.pipeline_mode<synchronous>, transform_indices = @transform_3, window_bounds = array<i64: 1, 128>}, {pipeline_mode = #tpu.pipeline_mode<synchronous>, transform_indices = @transform_4, window_bounds = array<i64: 128, 320>}, {pipeline_mode = #tpu.pipeline_mode<synchronous>, transform_indices = @transform_5, window_bounds = array<i64: 1, 320>}, {pipeline_mode = #tpu.pipeline_mode<synchronous>, transform_indices = @transform_6, window_bounds = array<i64: 64, 256>}, {pipeline_mode = #tpu.pipeline_mode<synchronous>, transform_indices = @transform_7, window_bounds = array<i64: 320, 256>}, {pipeline_mode = #tpu.pipeline_mode<synchronous>, transform_indices = @transform_8, window_bounds = array<i64: 1, 256>}, {pipeline_mode = #tpu.pipeline_mode<synchronous>, transform_indices = @transform_9, window_bounds = array<i64: 256, 256>}, {pipeline_mode = #tpu.pipeline_mode<synchronous>, transform_indices = @transform_10, window_bounds = array<i64: 1, 256>}, {pipeline_mode = #tpu.pipeline_mode<synchronous>, transform_indices = @transform_11, window_bounds = array<i64: 256, 128>}, {pipeline_mode = #tpu.pipeline_mode<synchronous>, transform_indices = @transform_12, window_bounds = array<i64: 1, 128>}, {transform_indices = @transform_13, window_bounds = array<i64: 32, 128>}]} {
    %c0 = arith.constant 0 : index
    %c0_0 = arith.constant 0 : index
    %0 = vector.load %arg2[%c0, %c0_0] : memref<32x32xf32, #tpu.memory_space<vmem>>, vector<32x32xf32>
    %1 = arith.truncf %0 : vector<32x32xf32> to vector<32x32xbf16>
    %c0_1 = arith.constant 0 : index
    %c0_2 = arith.constant 0 : index
    %2 = vector.load %arg3[%c0_1, %c0_2] : memref<32x128xbf16, #tpu.memory_space<vmem>>, vector<32x128xbf16>
    %cst = arith.constant dense<0.000000e+00> : vector<32x128xf32>
    %3 = tpu.matmul %1, %2, %cst {dimension_numbers = #tpu.dot_dimension_numbers<[1], [0], [0], [1], [0, 0, 1, 1], [], []>} : vector<32x32xbf16>, vector<32x128xbf16>, vector<32x128xf32> -> vector<32x128xf32>
    %c0_3 = arith.constant 0 : index
    %c0_4 = arith.constant 0 : index
    %4 = vector.load %arg4[%c0_3, %c0_4] : memref<1x128xf32, #tpu.memory_space<vmem>>, vector<1x128xf32>
    %5 = vector.broadcast %4 : vector<1x128xf32> to vector<32x128xf32>
    %6 = arith.addf %3, %5 : vector<32x128xf32>
    %7 = arith.negf %6 : vector<32x128xf32>
    %8 = math.exp %7 : vector<32x128xf32>
    %cst_5 = arith.constant 1.000000e+00 : f32
    %9 = vector.broadcast %cst_5 : f32 to vector<32x128xf32>
    %10 = arith.addf %9, %8 : vector<32x128xf32>
    %11 = arith.divf %9, %10 : vector<32x128xf32>
    %12 = arith.mulf %6, %11 : vector<32x128xf32>
    %13 = arith.truncf %12 : vector<32x128xf32> to vector<32x128xbf16>
    %c0_6 = arith.constant 0 : index
    %c0_7 = arith.constant 0 : index
    %14 = vector.load %arg5[%c0_6, %c0_7] : memref<128x320xbf16, #tpu.memory_space<vmem>>, vector<128x320xbf16>
    %cst_8 = arith.constant dense<0.000000e+00> : vector<32x320xf32>
    %15 = tpu.matmul %13, %14, %cst_8 {dimension_numbers = #tpu.dot_dimension_numbers<[1], [0], [0], [1], [0, 0, 1, 1], [], []>} : vector<32x128xbf16>, vector<128x320xbf16>, vector<32x320xf32> -> vector<32x320xf32>
    %c0_9 = arith.constant 0 : index
    %c0_10 = arith.constant 0 : index
    %16 = vector.load %arg6[%c0_9, %c0_10] : memref<1x320xf32, #tpu.memory_space<vmem>>, vector<1x320xf32>
    %17 = vector.broadcast %16 : vector<1x320xf32> to vector<32x320xf32>
    %18 = arith.addf %15, %17 : vector<32x320xf32>
    %c0_11 = arith.constant 0 : index
    %c0_12 = arith.constant 0 : index
    %19 = vector.load %arg1[%c0_11, %c0_12] : memref<32x64xbf16, #tpu.memory_space<vmem>>, vector<32x64xbf16>
    %c0_13 = arith.constant 0 : index
    %c0_14 = arith.constant 0 : index
    %20 = vector.load %arg7[%c0_13, %c0_14] : memref<64x256xbf16, #tpu.memory_space<vmem>>, vector<64x256xbf16>
    %cst_15 = arith.constant dense<0.000000e+00> : vector<32x256xf32>
    %21 = tpu.matmul %19, %20, %cst_15 {dimension_numbers = #tpu.dot_dimension_numbers<[1], [0], [0], [1], [0, 0, 1, 1], [], []>} : vector<32x64xbf16>, vector<64x256xbf16>, vector<32x256xf32> -> vector<32x256xf32>
    %22 = arith.truncf %18 : vector<32x320xf32> to vector<32x320xbf16>
    %c0_16 = arith.constant 0 : index
    %c0_17 = arith.constant 0 : index
    %23 = vector.load %arg8[%c0_16, %c0_17] : memref<320x256xbf16, #tpu.memory_space<vmem>>, vector<320x256xbf16>
    %cst_18 = arith.constant dense<0.000000e+00> : vector<32x256xf32>
    %24 = tpu.matmul %22, %23, %cst_18 {dimension_numbers = #tpu.dot_dimension_numbers<[1], [0], [0], [1], [0, 0, 1, 1], [], []>} : vector<32x320xbf16>, vector<320x256xbf16>, vector<32x256xf32> -> vector<32x256xf32>
    %25 = arith.addf %21, %24 : vector<32x256xf32>
    %c0_19 = arith.constant 0 : index
    %c0_20 = arith.constant 0 : index
    %26 = vector.load %arg9[%c0_19, %c0_20] : memref<1x256xf32, #tpu.memory_space<vmem>>, vector<1x256xf32>
    %27 = vector.broadcast %26 : vector<1x256xf32> to vector<32x256xf32>
    %28 = arith.addf %25, %27 : vector<32x256xf32>
    %29 = arith.negf %28 : vector<32x256xf32>
    %30 = math.exp %29 : vector<32x256xf32>
    %cst_21 = arith.constant 1.000000e+00 : f32
    %31 = vector.broadcast %cst_21 : f32 to vector<32x256xf32>
    %32 = arith.addf %31, %30 : vector<32x256xf32>
    %33 = arith.divf %31, %32 : vector<32x256xf32>
    %34 = arith.mulf %28, %33 : vector<32x256xf32>
    %35 = arith.truncf %34 : vector<32x256xf32> to vector<32x256xbf16>
    %c0_22 = arith.constant 0 : index
    %c0_23 = arith.constant 0 : index
    %36 = vector.load %arg10[%c0_22, %c0_23] : memref<256x256xbf16, #tpu.memory_space<vmem>>, vector<256x256xbf16>
    %cst_24 = arith.constant dense<0.000000e+00> : vector<32x256xf32>
    %37 = tpu.matmul %35, %36, %cst_24 {dimension_numbers = #tpu.dot_dimension_numbers<[1], [0], [0], [1], [0, 0, 1, 1], [], []>} : vector<32x256xbf16>, vector<256x256xbf16>, vector<32x256xf32> -> vector<32x256xf32>
    %c0_25 = arith.constant 0 : index
    %c0_26 = arith.constant 0 : index
    %38 = vector.load %arg11[%c0_25, %c0_26] : memref<1x256xf32, #tpu.memory_space<vmem>>, vector<1x256xf32>
    %39 = vector.broadcast %38 : vector<1x256xf32> to vector<32x256xf32>
    %40 = arith.addf %37, %39 : vector<32x256xf32>
    %41 = arith.negf %40 : vector<32x256xf32>
    %42 = math.exp %41 : vector<32x256xf32>
    %cst_27 = arith.constant 1.000000e+00 : f32
    %43 = vector.broadcast %cst_27 : f32 to vector<32x256xf32>
    %44 = arith.addf %43, %42 : vector<32x256xf32>
    %45 = arith.divf %43, %44 : vector<32x256xf32>
    %46 = arith.mulf %40, %45 : vector<32x256xf32>
    %47 = arith.truncf %46 : vector<32x256xf32> to vector<32x256xbf16>
    %c0_28 = arith.constant 0 : index
    %c0_29 = arith.constant 0 : index
    %48 = vector.load %arg12[%c0_28, %c0_29] : memref<256x128xbf16, #tpu.memory_space<vmem>>, vector<256x128xbf16>
    %cst_30 = arith.constant dense<0.000000e+00> : vector<32x128xf32>
    %49 = tpu.matmul %47, %48, %cst_30 {dimension_numbers = #tpu.dot_dimension_numbers<[1], [0], [0], [1], [0, 0, 1, 1], [], []>} : vector<32x256xbf16>, vector<256x128xbf16>, vector<32x128xf32> -> vector<32x128xf32>
    %c0_31 = arith.constant 0 : index
    %c0_32 = arith.constant 0 : index
    %50 = vector.load %arg13[%c0_31, %c0_32] : memref<1x128xf32, #tpu.memory_space<vmem>>, vector<1x128xf32>
    %51 = vector.broadcast %50 : vector<1x128xf32> to vector<32x128xf32>
    %52 = arith.addf %49, %51 : vector<32x128xf32>
    %c0_33 = arith.constant 0 : index
    %c0_34 = arith.constant 0 : index
    %53 = vector.load %arg14[%c0_33, %c0_34] : memref<32x128xf32, #tpu.memory_space<vmem>>, vector<32x128xf32>
    tpu.vector_store %arg14[%c0_33, %c0_34], %52 {strides = array<i32>} : memref<32x128xf32, #tpu.memory_space<vmem>>, vector<32x128xf32>,
    return
  }
  func.func @transform_0(%arg0: i32) -> (i32, i32) {
    %c0_i32 = arith.constant 0 : i32
    %c0_i32_0 = arith.constant 0 : i32
    return %arg0, %c0_i32 : i32, i32
  }
  func.func @transform_1(%arg0: i32) -> (i32, i32) {
    %c0_i32 = arith.constant 0 : i32
    %c0_i32_0 = arith.constant 0 : i32
    return %arg0, %c0_i32 : i32, i32
  }
  func.func @transform_2(%arg0: i32) -> (i32, i32) {
    %c0_i32 = arith.constant 0 : i32
    %c0_i32_0 = arith.constant 0 : i32
    %c0_i32_1 = arith.constant 0 : i32
    return %c0_i32, %c0_i32_0 : i32, i32
  }
  func.func @transform_3(%arg0: i32) -> (i32, i32) {
    %c0_i32 = arith.constant 0 : i32
    %c0_i32_0 = arith.constant 0 : i32
    %c0_i32_1 = arith.constant 0 : i32
    return %c0_i32, %c0_i32_0 : i32, i32
  }
  func.func @transform_4(%arg0: i32) -> (i32, i32) {
    %c0_i32 = arith.constant 0 : i32
    %c0_i32_0 = arith.constant 0 : i32
    %c0_i32_1 = arith.constant 0 : i32
    return %c0_i32, %c0_i32_0 : i32, i32
  }
  func.func @transform_5(%arg0: i32) -> (i32, i32) {
    %c0_i32 = arith.constant 0 : i32
    %c0_i32_0 = arith.constant 0 : i32
    %c0_i32_1 = arith.constant 0 : i32
    return %c0_i32, %c0_i32_0 : i32, i32
  }
  func.func @transform_6(%arg0: i32) -> (i32, i32) {
    %c0_i32 = arith.constant 0 : i32
    %c0_i32_0 = arith.constant 0 : i32
    %c0_i32_1 = arith.constant 0 : i32
    return %c0_i32, %c0_i32_0 : i32, i32
  }
  func.func @transform_7(%arg0: i32) -> (i32, i32) {
    %c0_i32 = arith.constant 0 : i32
    %c0_i32_0 = arith.constant 0 : i32
    %c0_i32_1 = arith.constant 0 : i32
    return %c0_i32, %c0_i32_0 : i32, i32
  }
  func.func @transform_8(%arg0: i32) -> (i32, i32) {
    %c0_i32 = arith.constant 0 : i32
    %c0_i32_0 = arith.constant 0 : i32
    %c0_i32_1 = arith.constant 0 : i32
    return %c0_i32, %c0_i32_0 : i32, i32
  }
  func.func @transform_9(%arg0: i32) -> (i32, i32) {
    %c0_i32 = arith.constant 0 : i32
    %c0_i32_0 = arith.constant 0 : i32
    %c0_i32_1 = arith.constant 0 : i32
    return %c0_i32, %c0_i32_0 : i32, i32
  }
  func.func @transform_10(%arg0: i32) -> (i32, i32) {
    %c0_i32 = arith.constant 0 : i32
    %c0_i32_0 = arith.constant 0 : i32
    %c0_i32_1 = arith.constant 0 : i32
    return %c0_i32, %c0_i32_0 : i32, i32
  }
  func.func @transform_11(%arg0: i32) -> (i32, i32) {
    %c0_i32 = arith.constant 0 : i32
    %c0_i32_0 = arith.constant 0 : i32
    %c0_i32_1 = arith.constant 0 : i32
    return %c0_i32, %c0_i32_0 : i32, i32
  }
  func.func @transform_12(%arg0: i32) -> (i32, i32) {
    %c0_i32 = arith.constant 0 : i32
    %c0_i32_0 = arith.constant 0 : i32
    %c0_i32_1 = arith.constant 0 : i32
    return %c0_i32, %c0_i32_0 : i32, i32
  }
  func.func @transform_13(%arg0: i32) -> (i32, i32) {
    %c0_i32 = arith.constant 0 : i32
    %c0_i32_0 = arith.constant 0 : i32
    return %arg0, %c0_i32 : i32, i32
  }
}

</mosaic_0001>

<llo_original>
// kernel: _generator_pallas.1
$region0: #{_generator_pallas.1}
  #allocation0 [shape = 'u32[]', space=smem, size = 0x4, offset = 0x4, fixed_abs, tag = 'smem constant byte address 0x4 - core index']
  #allocation1 [shape = 'u32[144,128]{1,0:T(1,128)}', space=vmem, size = 0x12000, scoped, tag = 'internal scratch']
  %s0 = inlined_call_operand.vmem [shape: bf16[256,64], index: 0, kind: input, shape index: {}]
  %s1 = inlined_call_operand.vmem [shape: f32[256,32], index: 1, kind: input, shape index: {}]
  %s2 = inlined_call_operand.vmem [shape: bf16[32,128], index: 2, kind: input, shape index: {}]
  %s3 = inlined_call_operand.vmem [shape: f32[1,128], index: 3, kind: input, shape index: {}]
  %s4 = inlined_call_operand.vmem [shape: bf16[128,320], index: 4, kind: input, shape index: {}]
  %s5 = inlined_call_operand.vmem [shape: f32[1,320], index: 5, kind: input, shape index: {}]
  %s6 = inlined_call_operand.vmem [shape: bf16[64,256], index: 6, kind: input, shape index: {}]
  %s7 = inlined_call_operand.vmem [shape: bf16[320,256], index: 7, kind: input, shape index: {}]
  %s8 = inlined_call_operand.vmem [shape: f32[1,256], index: 8, kind: input, shape index: {}]
  %s9 = inlined_call_operand.vmem [shape: bf16[256,256], index: 9, kind: input, shape index: {}]
  %s10 = inlined_call_operand.vmem [shape: f32[1,256], index: 10, kind: input, shape index: {}]
  %s11 = inlined_call_operand.vmem [shape: bf16[256,128], index: 11, kind: input, shape index: {}]
  %s12 = inlined_call_operand.vmem [shape: f32[1,128], index: 12, kind: input, shape index: {}]
  %s13 = inlined_call_operand.vmem [shape: f32[256,128], index: 13, kind: output, shape index: {}]
  %s14 = sld [smem:[#allocation0]]
  $region85: #{_generator_pallas.1} parent=0
    _
  %s16 = ssub.s32 1, %s14
  %s17 = scalar_select 0, %s16, %s14
  loop: start=0, step=1, limit=10
  $region2: #{_generator_pallas.1} parent=0 // loop_pre_header
    _
  $region3: #{_generator_pallas.1} parent=0 // loop_header
    %s19 = sphi 0, %s23
    %p20 = scmp.ge.s32.totalorder %s19, 10
    %s29 = sphi 0, %s31
    %s32 = sphi 0, %s29
    %s33 = sphi 0, %s32
    %s49 = sphi 0, %s33
    %s55 = sphi 0, %s57
    %s58 = sphi 0, %s55
    %s59 = sphi 0, %s58
    %s75 = sphi 0, %s59
    %s79 = sphi 0, %s79
    %s81 = sphi 0, %s79
    %s82 = sphi 0, %s81
    %s96 = sphi 0, %s82
    %s100 = sphi 0, %s100
    %s102 = sphi 0, %s100
    %s103 = sphi 0, %s102
    %s117 = sphi 0, %s103
    %s121 = sphi 0, %s121
    %s123 = sphi 0, %s121
    %s124 = sphi 0, %s123
    %s138 = sphi 0, %s124
    %s142 = sphi 0, %s142
    %s144 = sphi 0, %s142
    %s145 = sphi 0, %s144
    %s159 = sphi 0, %s145
    %s163 = sphi 0, %s163
    %s165 = sphi 0, %s163
    %s166 = sphi 0, %s165
    %s180 = sphi 0, %s166
    %s184 = sphi 0, %s184
    %s186 = sphi 0, %s184
    %s187 = sphi 0, %s186
    %s201 = sphi 0, %s187
    %s205 = sphi 0, %s205
    %s207 = sphi 0, %s205
    %s208 = sphi 0, %s207
    %s222 = sphi 0, %s208
    %s226 = sphi 0, %s226
    %s228 = sphi 0, %s226
    %s229 = sphi 0, %s228
    %s243 = sphi 0, %s229
    %s247 = sphi 0, %s247
    %s249 = sphi 0, %s247
    %s250 = sphi 0, %s249
    %s264 = sphi 0, %s250
    %s268 = sphi 0, %s268
    %s270 = sphi 0, %s268
    %s271 = sphi 0, %s270
    %s285 = sphi 0, %s271
    %s289 = sphi 0, %s289
    %s291 = sphi 0, %s289
    %s292 = sphi 0, %s291
    %s306 = sphi 0, %s292
    %s312 = sphi 0, %s314
    %s315 = sphi 0, %s312
    %s316 = sphi 0, %s315
    %s332 = sphi 0, %s316
  $region4: #{_generator_pallas.1} parent=0 // loop_header_branch
    %22 = sbr.rel (%p20) target = $region8
  $region5: #{_generator_pallas.1} parent=0 // loop_body
    %s24 = ssub.s32 %s19, 1
    %s25 = ssub.s32 %s19, 2
    %s26 = sadd.s32 %s19, 1
    %s27 = ssub.s32 %s19, %s26
    %p28 = scmp.eq.s32.totalorder %s27, 0
    %s30 = sadd.s32 %s29, 1
    %s31 = scalar_select %p28, %s29, %s30
    %p34 = pneg %p28
    %p35 = scmp.eq.s32.totalorder %s19, 7
    %p36 = por %p34, %p35
    %p37 = scmp.ne.s32.totalorder %s29, %s32
    %p38 = scmp.eq.s32.totalorder %s19, 0
    %p39 = por %p37, %p38
    %p40 = scmp.ne.s32.totalorder %s29, %s32
    %p41 = scmp.eq.s32.totalorder %s24, 7
    %p42 = por %p40, %p41
    %p43 = scmp.ne.s32.totalorder %s32, %s33
    %p44 = scmp.eq.s32.totalorder %s24, 0
    %p45 = por %p43, %p44
    %p46 = scmp.ne.s32.totalorder %s32, %s33
    %p47 = scmp.eq.s32.totalorder %s25, 7
    %p48 = por %p46, %p47
    %p50 = scmp.ne.s32.totalorder %s33, %s49
    %p51 = scmp.eq.s32.totalorder %s25, 0
    %p52 = por %p50, %p51
    %s53 = ssub.s32 %s19, %s26
    %p54 = scmp.eq.s32.totalorder %s53, 0
    %s56 = sadd.s32 %s55, 1
    %s57 = scalar_select %p54, %s55, %s56
    %p60 = pneg %p54
    %p61 = scmp.eq.s32.totalorder %s19, 7
    %p62 = por %p60, %p61
    %p63 = scmp.ne.s32.totalorder %s55, %s58
    %p64 = scmp.eq.s32.totalorder %s19, 0
    %p65 = por %p63, %p64
    %p66 = scmp.ne.s32.totalorder %s55, %s58
    %p67 = scmp.eq.s32.totalorder %s24, 7
    %p68 = por %p66, %p67
    %p69 = scmp.ne.s32.totalorder %s58, %s59
    %p70 = scmp.eq.s32.totalorder %s24, 0
    %p71 = por %p69, %p70
    %p72 = scmp.ne.s32.totalorder %s58, %s59
    %p73 = scmp.eq.s32.totalorder %s25, 7
    %p74 = por %p72, %p73
    %p76 = scmp.ne.s32.totalorder %s59, %s75
    %p77 = scmp.eq.s32.totalorder %s25, 0
    %p78 = por %p76, %p77
    %s80 = sadd.s32 %s79, 1
    %p83 = scmp.eq.s32.totalorder %s19, 7
    %p84 = scmp.ne.s32.totalorder %s79, %s81
    %p85 = scmp.eq.s32.totalorder %s19, 0
    %p86 = por %p84, %p85
    %p87 = scmp.ne.s32.totalorder %s79, %s81
    %p88 = scmp.eq.s32.totalorder %s24, 7
    %p89 = por %p87, %p88
    %p90 = scmp.ne.s32.totalorder %s81, %s82
    %p91 = scmp.eq.s32.totalorder %s24, 0
    %p92 = por %p90, %p91
    %p93 = scmp.ne.s32.totalorder %s81, %s82
    %p94 = scmp.eq.s32.totalorder %s25, 7
    %p95 = por %p93, %p94
    %p97 = scmp.ne.s32.totalorder %s82, %s96
    %p98 = scmp.eq.s32.totalorder %s25, 0
    %p99 = por %p97, %p98
    %s101 = sadd.s32 %s100, 1
    %p104 = scmp.eq.s32.totalorder %s19, 7
    %p105 = scmp.ne.s32.totalorder %s100, %s102
    %p106 = scmp.eq.s32.totalorder %s19, 0
    %p107 = por %p105, %p106
    %p108 = scmp.ne.s32.totalorder %s100, %s102
    %p109 = scmp.eq.s32.totalorder %s24, 7
    %p110 = por %p108, %p109
    %p111 = scmp.ne.s32.totalorder %s102, %s103
    %p112 = scmp.eq.s32.totalorder %s24, 0
    %p113 = por %p111, %p112
    %p114 = scmp.ne.s32.totalorder %s102, %s103
    %p115 = scmp.eq.s32.totalorder %s25, 7
    %p116 = por %p114, %p115
    %p118 = scmp.ne.s32.totalorder %s103, %s117
    %p119 = scmp.eq.s32.totalorder %s25, 0
    %p120 = por %p118, %p119
    %s122 = sadd.s32 %s121, 1
    %p125 = scmp.eq.s32.totalorder %s19, 7
    %p126 = scmp.ne.s32.totalorder %s121, %s123
    %p127 = scmp.eq.s32.totalorder %s19, 0
    %p128 = por %p126, %p127
    %p129 = scmp.ne.s32.totalorder %s121, %s123
    %p130 = scmp.eq.s32.totalorder %s24, 7
    %p131 = por %p129, %p130
    %p132 = scmp.ne.s32.totalorder %s123, %s124
    %p133 = scmp.eq.s32.totalorder %s24, 0
    %p134 = por %p132, %p133
    %p135 = scmp.ne.s32.totalorder %s123, %s124
    %p136 = scmp.eq.s32.totalorder %s25, 7
    %p137 = por %p135, %p136
    %p139 = scmp.ne.s32.totalorder %s124, %s138
    %p140 = scmp.eq.s32.totalorder %s25, 0
    %p141 = por %p139, %p140
    %s143 = sadd.s32 %s142, 1
    %p146 = scmp.eq.s32.totalorder %s19, 7
    %p147 = scmp.ne.s32.totalorder %s142, %s144
    %p148 = scmp.eq.s32.totalorder %s19, 0
    %p149 = por %p147, %p148
    %p150 = scmp.ne.s32.totalorder %s142, %s144
    %p151 = scmp.eq.s32.totalorder %s24, 7
    %p152 = por %p150, %p151
    %p153 = scmp.ne.s32.totalorder %s144, %s145
    %p154 = scmp.eq.s32.totalorder %s24, 0
    %p155 = por %p153, %p154
    %p156 = scmp.ne.s32.totalorder %s144, %s145
    %p157 = scmp.eq.s32.totalorder %s25, 7
    %p158 = por %p156, %p157
    %p160 = scmp.ne.s32.totalorder %s145, %s159
    %p161 = scmp.eq.s32.totalorder %s25, 0
    %p162 = por %p160, %p161
    %s164 = sadd.s32 %s163, 1
    %p167 = scmp.eq.s32.totalorder %s19, 7
    %p168 = scmp.ne.s32.totalorder %s163, %s165
    %p169 = scmp.eq.s32.totalorder %s19, 0
    %p170 = por %p168, %p169
    %p171 = scmp.ne.s32.totalorder %s163, %s165
    %p172 = scmp.eq.s32.totalorder %s24, 7
    %p173 = por %p171, %p172
    %p174 = scmp.ne.s32.totalorder %s165, %s166
    %p175 = scmp.eq.s32.totalorder %s24, 0
    %p176 = por %p174, %p175
    %p177 = scmp.ne.s32.totalorder %s165, %s166
    %p178 = scmp.eq.s32.totalorder %s25, 7
    %p179 = por %p177, %p178
    %p181 = scmp.ne.s32.totalorder %s166, %s180
    %p182 = scmp.eq.s32.totalorder %s25, 0
    %p183 = por %p181, %p182
    %s185 = sadd.s32 %s184, 1
    %p188 = scmp.eq.s32.totalorder %s19, 7
    %p189 = scmp.ne.s32.totalorder %s184, %s186
    %p190 = scmp.eq.s32.totalorder %s19, 0
    %p191 = por %p189, %p190
    %p192 = scmp.ne.s32.totalorder %s184, %s186
    %p193 = scmp.eq.s32.totalorder %s24, 7
    %p194 = por %p192, %p193
    %p195 = scmp.ne.s32.totalorder %s186, %s187
    %p196 = scmp.eq.s32.totalorder %s24, 0
    %p197 = por %p195, %p196
    %p198 = scmp.ne.s32.totalorder %s186, %s187
    %p199 = scmp.eq.s32.totalorder %s25, 7
    %p200 = por %p198, %p199
    %p202 = scmp.ne.s32.totalorder %s187, %s201
    %p203 = scmp.eq.s32.totalorder %s25, 0
    %p204 = por %p202, %p203
    %s206 = sadd.s32 %s205, 1
    %p209 = scmp.eq.s32.totalorder %s19, 7
    %p210 = scmp.ne.s32.totalorder %s205, %s207
    %p211 = scmp.eq.s32.totalorder %s19, 0
    %p212 = por %p210, %p211
    %p213 = scmp.ne.s32.totalorder %s205, %s207
    %p214 = scmp.eq.s32.totalorder %s24, 7
    %p215 = por %p213, %p214
    %p216 = scmp.ne.s32.totalorder %s207, %s208
    %p217 = scmp.eq.s32.totalorder %s24, 0
    %p218 = por %p216, %p217
    %p219 = scmp.ne.s32.totalorder %s207, %s208
    %p220 = scmp.eq.s32.totalorder %s25, 7
    %p221 = por %p219, %p220
    %p223 = scmp.ne.s32.totalorder %s208, %s222
    %p224 = scmp.eq.s32.totalorder %s25, 0
    %p225 = por %p223, %p224
    %s227 = sadd.s32 %s226, 1
    %p230 = scmp.eq.s32.totalorder %s19, 7
    %p231 = scmp.ne.s32.totalorder %s226, %s228
    %p232 = scmp.eq.s32.totalorder %s19, 0
    %p233 = por %p231, %p232
    %p234 = scmp.ne.s32.totalorder %s226, %s228
    %p235 = scmp.eq.s32.totalorder %s24, 7
    %p236 = por %p234, %p235
    %p237 = scmp.ne.s32.totalorder %s228, %s229
    %p238 = scmp.eq.s32.totalorder %s24, 0
    %p239 = por %p237, %p238
    %p240 = scmp.ne.s32.totalorder %s228, %s229
    %p241 = scmp.eq.s32.totalorder %s25, 7
    %p242 = por %p240, %p241
    %p244 = scmp.ne.s32.totalorder %s229, %s243
    %p245 = scmp.eq.s32.totalorder %s25, 0
    %p246 = por %p244, %p245
    %s248 = sadd.s32 %s247, 1
    %p251 = scmp.eq.s32.totalorder %s19, 7
    %p252 = scmp.ne.s32.totalorder %s247, %s249
    %p253 = scmp.eq.s32.totalorder %s19, 0
    %p254 = por %p252, %p253
    %p255 = scmp.ne.s32.totalorder %s247, %s249
    %p256 = scmp.eq.s32.totalorder %s24, 7
    %p257 = por %p255, %p256
    %p258 = scmp.ne.s32.totalorder %s249, %s250
    %p259 = scmp.eq.s32.totalorder %s24, 0
    %p260 = por %p258, %p259
    %p261 = scmp.ne.s32.totalorder %s249, %s250
    %p262 = scmp.eq.s32.totalorder %s25, 7
    %p263 = por %p261, %p262
    %p265 = scmp.ne.s32.totalorder %s250, %s264
    %p266 = scmp.eq.s32.totalorder %s25, 0
    %p267 = por %p265, %p266
    %s269 = sadd.s32 %s268, 1
    %p272 = scmp.eq.s32.totalorder %s19, 7
    %p273 = scmp.ne.s32.totalorder %s268, %s270
    %p274 = scmp.eq.s32.totalorder %s19, 0
    %p275 = por %p273, %p274
    %p276 = scmp.ne.s32.totalorder %s268, %s270
    %p277 = scmp.eq.s32.totalorder %s24, 7
    %p278 = por %p276, %p277
    %p279 = scmp.ne.s32.totalorder %s270, %s271
    %p280 = scmp.eq.s32.totalorder %s24, 0
    %p281 = por %p279, %p280
    %p282 = scmp.ne.s32.totalorder %s270, %s271
    %p283 = scmp.eq.s32.totalorder %s25, 7
    %p284 = por %p282, %p283
    %p286 = scmp.ne.s32.totalorder %s271, %s285
    %p287 = scmp.eq.s32.totalorder %s25, 0
    %p288 = por %p286, %p287
    %s290 = sadd.s32 %s289, 1
    %p293 = scmp.eq.s32.totalorder %s19, 7
    %p294 = scmp.ne.s32.totalorder %s289, %s291
    %p295 = scmp.eq.s32.totalorder %s19, 0
    %p296 = por %p294, %p295
    %p297 = scmp.ne.s32.totalorder %s289, %s291
    %p298 = scmp.eq.s32.totalorder %s24, 7
    %p299 = por %p297, %p298
    %p300 = scmp.ne.s32.totalorder %s291, %s292
    %p301 = scmp.eq.s32.totalorder %s24, 0
    %p302 = por %p300, %p301
    %p303 = scmp.ne.s32.totalorder %s291, %s292
    %p304 = scmp.eq.s32.totalorder %s25, 7
    %p305 = por %p303, %p304
    %p307 = scmp.ne.s32.totalorder %s292, %s306
    %p308 = scmp.eq.s32.totalorder %s25, 0
    %p309 = por %p307, %p308
    %s310 = ssub.s32 %s19, %s26
    %p311 = scmp.eq.s32.totalorder %s310, 0
    %s313 = sadd.s32 %s312, 1
    %s314 = scalar_select %p311, %s312, %s313
    %p317 = pneg %p311
    %p318 = scmp.eq.s32.totalorder %s19, 7
    %p319 = por %p317, %p318
    %p320 = scmp.ne.s32.totalorder %s312, %s315
    %p321 = scmp.eq.s32.totalorder %s19, 0
    %p322 = por %p320, %p321
    %p323 = scmp.ne.s32.totalorder %s312, %s315
    %p324 = scmp.eq.s32.totalorder %s24, 7
    %p325 = por %p323, %p324
    %p326 = scmp.ne.s32.totalorder %s315, %s316
    %p327 = scmp.eq.s32.totalorder %s24, 0
    %p328 = por %p326, %p327
    %p329 = scmp.ne.s32.totalorder %s315, %s316
    %p330 = scmp.eq.s32.totalorder %s25, 7
    %p331 = por %p329, %p330
    %p333 = scmp.ne.s32.totalorder %s316, %s332
    %p334 = scmp.eq.s32.totalorder %s25, 0
    %p335 = por %p333, %p334
    %p336 = scmp.le.s32.totalorder 1, %s19
    %p337 = scmp.lt.s32.totalorder %s19, 9
    %p338 = pnand %p336, %p337
    %p339 = pneg %p338
    // Predicated region
    $region9: #{_generator_pallas.1} parent=5 // pred_check
      _
    $region10: #{_generator_pallas.1} parent=5 // pred_check_branch
      %341 = sbr.rel (%p338) target = $region12
    $region11: #{_generator_pallas.1} parent=5 // pred_region
      %s342 = ssub.s32 %s19, 1
      // Predicated region
      $region13: #{_generator_pallas.1} parent=11 // pred_check
        %p343 = pneg %p92
      $region14: #{_generator_pallas.1} parent=11 // pred_check_branch
        %345 = sbr.rel (%p343) target = $region16
      $region15: #{_generator_pallas.1} parent=11 // pred_region
        _
      $region16: #{_generator_pallas.1} parent=11 // pred_fallthru
        _
      // Predicated region
      $region17: #{_generator_pallas.1} parent=11 // pred_check
        %p346 = pneg %p113
      $region18: #{_generator_pallas.1} parent=11 // pred_check_branch
        %348 = sbr.rel (%p346) target = $region20
      $region19: #{_generator_pallas.1} parent=11 // pred_region
        _
      $region20: #{_generator_pallas.1} parent=11 // pred_fallthru
        _
      // Predicated region
      $region21: #{_generator_pallas.1} parent=11 // pred_check
        %p349 = pneg %p134
      $region22: #{_generator_pallas.1} parent=11 // pred_check_branch
        %351 = sbr.rel (%p349) target = $region24
      $region23: #{_generator_pallas.1} parent=11 // pred_region
        _
      $region24: #{_generator_pallas.1} parent=11 // pred_fallthru
        _
      // Predicated region
      $region25: #{_generator_pallas.1} parent=11 // pred_check
        %p352 = pneg %p155
      $region26: #{_generator_pallas.1} parent=11 // pred_check_branch
        %354 = sbr.rel (%p352) target = $region28
      $region27: #{_generator_pallas.1} parent=11 // pred_region
        _
      $region28: #{_generator_pallas.1} parent=11 // pred_fallthru
        _
      // Predicated region
      $region29: #{_generator_pallas.1} parent=11 // pred_check
        %p355 = pneg %p176
      $region30: #{_generator_pallas.1} parent=11 // pred_check_branch
        %357 = sbr.rel (%p355) target = $region32
      $region31: #{_generator_pallas.1} parent=11 // pred_region
        _
      $region32: #{_generator_pallas.1} parent=11 // pred_fallthru
        _
      // Predicated region
      $region33: #{_generator_pallas.1} parent=11 // pred_check
        %p358 = pneg %p197
      $region34: #{_generator_pallas.1} parent=11 // pred_check_branch
        %360 = sbr.rel (%p358) target = $region36
      $region35: #{_generator_pallas.1} parent=11 // pred_region
        _
      $region36: #{_generator_pallas.1} parent=11 // pred_fallthru
        _
      // Predicated region
      $region37: #{_generator_pallas.1} parent=11 // pred_check
        %p361 = pneg %p218
      $region38: #{_generator_pallas.1} parent=11 // pred_check_branch
        %363 = sbr.rel (%p361) target = $region40
      $region39: #{_generator_pallas.1} parent=11 // pred_region
        _
      $region40: #{_generator_pallas.1} parent=11 // pred_fallthru
        _
      // Predicated region
      $region41: #{_generator_pallas.1} parent=11 // pred_check
        %p364 = pneg %p239
      $region42: #{_generator_pallas.1} parent=11 // pred_check_branch
        %366 = sbr.rel (%p364) target = $region44
      $region43: #{_generator_pallas.1} parent=11 // pred_region
        _
      $region44: #{_generator_pallas.1} parent=11 // pred_fallthru
        _
      // Predicated region
      $region45: #{_generator_pallas.1} parent=11 // pred_check
        %p367 = pneg %p260
      $region46: #{_generator_pallas.1} parent=11 // pred_check_branch
        %369 = sbr.rel (%p367) target = $region48
      $region47: #{_generator_pallas.1} parent=11 // pred_region
        _
      $region48: #{_generator_pallas.1} parent=11 // pred_fallthru
        _
      // Predicated region
      $region49: #{_generator_pallas.1} parent=11 // pred_check
        %p370 = pneg %p281
      $region50: #{_generator_pallas.1} parent=11 // pred_check_branch
        %372 = sbr.rel (%p370) target = $region52
      $region51: #{_generator_pallas.1} parent=11 // pred_region
        _
      $region52: #{_generator_pallas.1} parent=11 // pred_fallthru
        _
      // Predicated region
      $region53: #{_generator_pallas.1} parent=11 // pred_check
        %p373 = pneg %p302
      $region54: #{_generator_pallas.1} parent=11 // pred_check_branch
        %375 = sbr.rel (%p373) target = $region56
      $region55: #{_generator_pallas.1} parent=11 // pred_region
        _
      $region56: #{_generator_pallas.1} parent=11 // pred_fallthru
        _
    $region12: #{_generator_pallas.1} parent=5 // pred_fallthru
      _
    %p376 = scmp.lt.s32.totalorder %s19, 8
    // Predicated region
    $region57: #{_generator_pallas.1} parent=5 // pred_check
      %p377 = pneg %p376
    $region58: #{_generator_pallas.1} parent=5 // pred_check_branch
      %379 = sbr.rel (%p377) target = $region60
    $region59: #{_generator_pallas.1} parent=5 // pred_region
      // Predicated region
      $region61: #{_generator_pallas.1} parent=59 // pred_check
        %p380 = pneg %p39
      $region62: #{_generator_pallas.1} parent=59 // pred_check_branch
        %382 = sbr.rel (%p380) target = $region64
      $region63: #{_generator_pallas.1} parent=59 // pred_region
        %s383 = smul.u32 4, %s19
        %p384 = scmp.lt.s32.totalorder %s383, 31
        %s385 = scalar_select %p384, %s383, 31
        %s386 = smul.addr %s385, 4
        %s387 = scalar_lea.vmem %s0, %s386
        %s388 = smul.u32 4, %s19
      $region64: #{_generator_pallas.1} parent=59 // pred_fallthru
        _
      // Predicated region
      $region65: #{_generator_pallas.1} parent=59 // pred_check
        %p389 = pneg %p65
      $region66: #{_generator_pallas.1} parent=59 // pred_check_branch
        %391 = sbr.rel (%p389) target = $region68
      $region67: #{_generator_pallas.1} parent=59 // pred_region
        %s392 = smul.u32 4, %s19
        %p393 = scmp.lt.s32.totalorder %s392, 31
        %s394 = scalar_select %p393, %s392, 31
        %s395 = smul.addr %s394, 8
        %s396 = scalar_lea.vmem %s1, %s395
        %s397 = smul.u32 4, %s19
      $region68: #{_generator_pallas.1} parent=59 // pred_fallthru
        _
    $region60: #{_generator_pallas.1} parent=5 // pred_fallthru
      _
    %p398 = scmp.le.s32.totalorder 1, %s19
    %p399 = scmp.lt.s32.totalorder %s19, 9
    %p400 = pnand %p398, %p399
    %p401 = pneg %p400
    // Predicated region
    $region69: #{_generator_pallas.1} parent=5 // pred_check
      _
    $region70: #{_generator_pallas.1} parent=5 // pred_check_branch
      %403 = sbr.rel (%p400) target = $region72
    $region71: #{_generator_pallas.1} parent=5 // pred_region
      %s404 = ssub.s32 %s19, 1
      %s405 = smul.u32 4, %s24
      %p406 = scmp.lt.s32.totalorder %s405, 31
      %s407 = scalar_select %p406, %s405, 31
      %s408 = smul.addr %s407, 4
      %s409 = scalar_lea.vmem %s0, %s408
      %p410 = pneg %p45
      %p411 = pneg %p42
      %s412 = smul.u32 4, %s24
      %p413 = scmp.lt.s32.totalorder %s412, 31
      %s414 = scalar_select %p413, %s412, 31
      %s415 = smul.addr %s414, 8
      %s416 = scalar_lea.vmem %s1, %s415
      %p417 = pneg %p71
      %p418 = pneg %p68
      %p419 = pneg %p92
      %p420 = pneg %p89
      %p421 = pneg %p113
      %p422 = pneg %p110
      %p423 = pneg %p134
      %p424 = pneg %p131
      %p425 = pneg %p155
      %p426 = pneg %p152
      %p427 = pneg %p176
      %p428 = pneg %p173
      %p429 = pneg %p197
      %p430 = pneg %p194
      %p431 = pneg %p218
      %p432 = pneg %p215
      %p433 = pneg %p239
      %p434 = pneg %p236
      %p435 = pneg %p260
      %p436 = pneg %p257
      %p437 = pneg %p281
      %p438 = pneg %p278
      %p439 = pneg %p302
      %p440 = pneg %p299
      %p441 = pneg %p328
      %p442 = pneg %p325
      %s443 = smul.u32 4, %s24
      %p444 = scmp.lt.s32.totalorder %s443, 31
      %s445 = scalar_select %p444, %s443, 31
      %s446 = smul.addr %s445, 8
      %s447 = scalar_lea.vmem %s13, %s446
      %s448 = smul.u32 4, %s24
      %p449 = scmp.lt.s32.totalorder %s448, 31
      %s450 = scalar_select %p449, %s448, 31
      %s451 = smul.addr %s450, 4
      %s452 = scalar_lea.vmem %s0, %s451
      %s453 = smul.u32 4, %s24
      %s454 = smul.u32 4, %s24
      %p455 = scmp.lt.s32.totalorder %s454, 31
      %s456 = scalar_select %p455, %s454, 31
      %s457 = smul.addr %s456, 8
      %s458 = scalar_lea.vmem %s1, %s457
      %s459 = smul.u32 4, %s24
      %s460 = smul.u32 4, %s24
      %p461 = scmp.lt.s32.totalorder %s460, 31
      %s462 = scalar_select %p461, %s460, 31
      %s463 = smul.addr %s462, 8
      %s464 = scalar_lea.vmem %s13, %s463
      %s465 = smul.u32 4, %s24
      %v467 = vld [vmem:[%s458] sm:$0xff]
      %v468 = vld [vmem:[%s458 + $0x8] sm:$0xff]
      %v469 = vld [vmem:[%s458 + $0x10] sm:$0xff]
      %v470 = vld [vmem:[%s458 + $0x18] sm:$0xff]
      %v471 = vpack.c.bf16 %v468, %v467
      %v472 = vpack.c.bf16 %v470, %v469
      %v473 = vld [vmem:[%s2] sm:$0xf]
      %v474 = vld [vmem:[%s2 + $0x4] sm:$0xf]
      %v475 = vld [vmem:[%s2 + $0x8] sm:$0xf]
      %v476 = vld [vmem:[%s2 + $0xc] sm:$0xf]
      %v477 = vld [vmem:[%s3] sm:$0x1]
      %v479 = vlaneseq
      %v480 = vshrl.u32 %v479, 7
      %v481 = vsub.s32 0, %v480
      %v482 = vrot.slane %v477, %v481
      %v488 = vunpack.c.l.b16 %v473
      %v489 = vunpack.c.l.b16 %v474
      %v490 = vunpack.c.l.b16 %v475
      %v491 = vunpack.c.l.b16 %v476
      %v492 = vpack.c.b16 %v489, %v488
      %v493 = vpack.c.b16 %v491, %v490
      %vm496 = vcmask 261120
      %v498 = vsel %vm496, %v471, 0
      %v501 = vsel %vm496, %v472, 0
      %503 = vmatprep.subr.bf16.mxu0 0
      %504 = vmatpush1.bf16.msra.mxu0 %v492
      %505 = vmatprep.subr.bf16.mxu0 0
      %506 = vmatpush1.bf16.msra.mxu0 %v493
      %507 = vmatprep.subr.bf16.mxu0 0
      %508 = vmatpush1.bf16.msra.mxu0 0
      %509 = vmatprep.subr.bf16.mxu0 0
      %510 = vmatpush1.bf16.msra.mxu0 0
      %511 = vmatprep.subr.bf16.mxu0 0
      %512 = vmatpush1.bf16.msra.mxu0 0
      %513 = vmatprep.subr.bf16.mxu0 0
      %514 = vmatpush1.bf16.msra.mxu0 0
      %515 = vmatprep.subr.bf16.mxu0 0
      %516 = vmatpush1.bf16.msra.mxu0 0
      %517 = vmatprep.subr.bf16.mxu0 0
      %518 = vmatpush1.bf16.msra.mxu0 0
      %519 = vmatprep.subr.bf16.mxu0 0
      %520 = vmatpush1.bf16.msra.mxu0 0
      %521 = vmatprep.subr.bf16.mxu0 0
      %522 = vmatpush1.bf16.msra.mxu0 0
      %523 = vmatprep.subr.bf16.mxu0 0
      %524 = vmatpush1.bf16.msra.mxu0 0
      %525 = vmatprep.subr.bf16.mxu0 0
      %526 = vmatpush1.bf16.msra.mxu0 0
      %527 = vmatprep.subr.bf16.mxu0 0
      %528 = vmatpush1.bf16.msra.mxu0 0
      %529 = vmatprep.subr.bf16.mxu0 0
      %530 = vmatpush1.bf16.msra.mxu0 0
      %531 = vmatprep.subr.bf16.mxu0 0
      %532 = vmatpush1.bf16.msra.mxu0 0
      %533 = vmatprep.subr.bf16.mxu0 0
      %534 = vmatpush1.bf16.msra.mxu0 0
      %535 = vmatprep.mubr.bf16.mxu0 0
      %536 = vmatmul.mubr.bf16.gmra.mrb[0].mxu0 %v498
      %v537 = vpop.f32.mrb[0].mxu0
      %v538 = vadd.f32 %v482, %v537
      %v539 = vpop.f32.mrb[0].mxu0
      %v540 = vpop.f32.mrb[0].mxu0
      %v541 = vadd.f32 %v482, %v540
      %v542 = vpop.f32.mrb[0].mxu0
      %543 = vmatprep.mubr.bf16.mxu0 0
      %544 = vmatmul.mubr.bf16.gmra.mrb[0].mxu0 %v501
      %v545 = vpop.f32.mrb[0].mxu0
      %v546 = vadd.f32 %v482, %v545
      %v547 = vpop.f32.mrb[0].mxu0
      %v548 = vpop.f32.mrb[0].mxu0
      %v549 = vadd.f32 %v482, %v548
      %v550 = vpop.f32.mrb[0].mxu0
      %551 = vdwg.mxu0
      %v552 = vxor.u32 %v538, 2147483648
      %v553 = vxor.u32 %v541, 2147483648
      %v554 = vxor.u32 %v546, 2147483648
      %v555 = vxor.u32 %v549, 2147483648
      %v556 = vmul.f32 %v552, 1.442695
      %v557 = vpow.pop %v556
      %v558 = vmul.f32 %v553, 1.442695
      %v559 = vpow.pop %v558
      %v560 = vmul.f32 %v554, 1.442695
      %v561 = vpow.pop %v560
      %v562 = vmul.f32 %v555, 1.442695
      %v563 = vpow.pop %v562
      %v564 = vadd.f32 %v557, 1.0
      %v565 = vadd.f32 %v559, 1.0
      %v566 = vadd.f32 %v561, 1.0
      %v567 = vadd.f32 %v563, 1.0
      %v568 = vrcp.pop %v564
      %v569 = vmul.f32 1.0, %v568
      %v570 = vrcp.pop %v565
      %v571 = vmul.f32 1.0, %v570
      %v572 = vrcp.pop %v566
      %v573 = vmul.f32 1.0, %v572
      %v574 = vrcp.pop %v567
      %v575 = vmul.f32 1.0, %v574
      %v576 = vmul.f32 %v538, %v569
      %v577 = vmul.f32 %v541, %v571
      %v578 = vmul.f32 %v546, %v573
      %v579 = vmul.f32 %v549, %v575
      %v580 = vpack.c.bf16 %v577, %v576
      %v581 = vpack.c.bf16 %v579, %v578
      %v582 = vld [vmem:[%s4] sm:$0xff]
      %v583 = vld [vmem:[%s4 + $0x8] sm:$0xf]
      %v584 = vld [vmem:[%s4 + $0xc] sm:$0xff]
      %v585 = vld [vmem:[%s4 + $0x14] sm:$0xf]
      %v586 = vld [vmem:[%s4 + $0x18] sm:$0xff]
      %v587 = vld [vmem:[%s4 + $0x20] sm:$0xf]
      %v588 = vld [vmem:[%s4 + $0x24] sm:$0xff]
      %v589 = vld [vmem:[%s4 + $0x2c] sm:$0xf]
      %v590 = vld [vmem:[%s4 + $0x30] sm:$0xff]
      %v591 = vld [vmem:[%s4 + $0x38] sm:$0xf]
      %v592 = vld [vmem:[%s4 + $0x3c] sm:$0xff]
      %v593 = vld [vmem:[%s4 + $0x44] sm:$0xf]
      %v594 = vld [vmem:[%s4 + $0x48] sm:$0xff]
      %v595 = vld [vmem:[%s4 + $0x50] sm:$0xf]
      %v596 = vld [vmem:[%s4 + $0x54] sm:$0xff]
      %v597 = vld [vmem:[%s4 + $0x5c] sm:$0xf]
      %v598 = vld [vmem:[%s4 + $0x60] sm:$0xff]
      %v599 = vld [vmem:[%s4 + $0x68] sm:$0xf]
      %v600 = vld [vmem:[%s4 + $0x6c] sm:$0xff]
      %v601 = vld [vmem:[%s4 + $0x74] sm:$0xf]
      %v602 = vld [vmem:[%s4 + $0x78] sm:$0xff]
      %v603 = vld [vmem:[%s4 + $0x80] sm:$0xf]
      %v604 = vld [vmem:[%s4 + $0x84] sm:$0xff]
      %v605 = vld [vmem:[%s4 + $0x8c] sm:$0xf]
      %v606 = vld [vmem:[%s4 + $0x90] sm:$0xff]
      %v607 = vld [vmem:[%s4 + $0x98] sm:$0xf]
      %v608 = vld [vmem:[%s4 + $0x9c] sm:$0xff]
      %v609 = vld [vmem:[%s4 + $0xa4] sm:$0xf]
      %v610 = vld [vmem:[%s4 + $0xa8] sm:$0xff]
      %v611 = vld [vmem:[%s4 + $0xb0] sm:$0xf]
      %v612 = vld [vmem:[%s4 + $0xb4] sm:$0xff]
      %v613 = vld [vmem:[%s4 + $0xbc] sm:$0xf]
      %v614 = vld [vmem:[%s5] sm:$0x7]
      %v616 = vlaneseq
      %v617 = vshrl.u32 %v616, 7
      %v618 = vsub.s32 0, %v617
      %v619 = vrot.slane %v614, %v618
      %v620 = vlaneseq
      %v621 = vshrl.u32 %v620, 7
      %v622 = vsub.s32 1, %v621
      %v623 = vrot.slane %v614, %v622
      %v624 = vlaneseq
      %v625 = vshrl.u32 %v624, 7
      %v626 = vsub.s32 2, %v625
      %v627 = vrot.slane %v614, %v626
      %v663 = vunpack.c.l.b16 %v582
      %v664 = vunpack.c.h.b16 %v582
      %v665 = vunpack.c.l.b16 %v583
      %v666 = vunpack.c.l.b16 %v584
      %v667 = vunpack.c.h.b16 %v584
      %v668 = vunpack.c.l.b16 %v585
      %v669 = vunpack.c.l.b16 %v586
      %v670 = vunpack.c.h.b16 %v586
      %v671 = vunpack.c.l.b16 %v587
      %v672 = vunpack.c.l.b16 %v588
      %v673 = vunpack.c.h.b16 %v588
      %v674 = vunpack.c.l.b16 %v589
      %v675 = vunpack.c.l.b16 %v590
      %v676 = vunpack.c.h.b16 %v590
      %v677 = vunpack.c.l.b16 %v591
      %v678 = vunpack.c.l.b16 %v592
      %v679 = vunpack.c.h.b16 %v592
      %v680 = vunpack.c.l.b16 %v593
      %v681 = vunpack.c.l.b16 %v594
      %v682 = vunpack.c.h.b16 %v594
      %v683 = vunpack.c.l.b16 %v595
      %v684 = vunpack.c.l.b16 %v596
      %v685 = vunpack.c.h.b16 %v596
      %v686 = vunpack.c.l.b16 %v597
      %v687 = vunpack.c.l.b16 %v598
      %v688 = vunpack.c.h.b16 %v598
      %v689 = vunpack.c.l.b16 %v599
      %v690 = vunpack.c.l.b16 %v600
      %v691 = vunpack.c.h.b16 %v600
      %v692 = vunpack.c.l.b16 %v601
      %v693 = vunpack.c.l.b16 %v602
      %v694 = vunpack.c.h.b16 %v602
      %v695 = vunpack.c.l.b16 %v603
      %v696 = vunpack.c.l.b16 %v604
      %v697 = vunpack.c.h.b16 %v604
      %v698 = vunpack.c.l.b16 %v605
      %v699 = vunpack.c.l.b16 %v606
      %v700 = vunpack.c.h.b16 %v606
      %v701 = vunpack.c.l.b16 %v607
      %v702 = vunpack.c.l.b16 %v608
      %v703 = vunpack.c.h.b16 %v608
      %v704 = vunpack.c.l.b16 %v609
      %v705 = vunpack.c.l.b16 %v610
      %v706 = vunpack.c.h.b16 %v610
      %v707 = vunpack.c.l.b16 %v611
      %v708 = vunpack.c.l.b16 %v612
      %v709 = vunpack.c.h.b16 %v612
      %v710 = vunpack.c.l.b16 %v613
      %v711 = vpack.c.b16 %v666, %v663
      %v712 = vpack.c.b16 %v667, %v664
      %v713 = vpack.c.b16 %v668, %v665
      %v714 = vpack.c.b16 %v672, %v669
      %v715 = vpack.c.b16 %v673, %v670
      %v716 = vpack.c.b16 %v674, %v671
      %v717 = vpack.c.b16 %v678, %v675
      %v718 = vpack.c.b16 %v679, %v676
      %v719 = vpack.c.b16 %v680, %v677
      %v720 = vpack.c.b16 %v684, %v681
      %v721 = vpack.c.b16 %v685, %v682
      %v722 = vpack.c.b16 %v686, %v683
      %v723 = vpack.c.b16 %v690, %v687
      %v724 = vpack.c.b16 %v691, %v688
      %v725 = vpack.c.b16 %v692, %v689
      %v726 = vpack.c.b16 %v696, %v693
      %v727 = vpack.c.b16 %v697, %v694
      %v728 = vpack.c.b16 %v698, %v695
      %v729 = vpack.c.b16 %v702, %v699
      %v730 = vpack.c.b16 %v703, %v700
      %v731 = vpack.c.b16 %v704, %v701
      %v732 = vpack.c.b16 %v708, %v705
      %v733 = vpack.c.b16 %v709, %v706
      %v734 = vpack.c.b16 %v710, %v707
      %759 = vmatprep.subr.bf16.mxu0 %v712
      %760 = vmatpush1.bf16.msra.mxu0 %v711
      %761 = vmatprep.subr.bf16.mxu0 %v715
      %762 = vmatpush1.bf16.msra.mxu0 %v714
      %763 = vmatprep.subr.bf16.mxu0 %v718
      %764 = vmatpush1.bf16.msra.mxu0 %v717
      %765 = vmatprep.subr.bf16.mxu0 %v721
      %766 = vmatpush1.bf16.msra.mxu0 %v720
      %767 = vmatprep.subr.bf16.mxu0 %v724
      %768 = vmatpush1.bf16.msra.mxu0 %v723
      %769 = vmatprep.subr.bf16.mxu0 %v727
      %770 = vmatpush1.bf16.msra.mxu0 %v726
      %771 = vmatprep.subr.bf16.mxu0 %v730
      %772 = vmatpush1.bf16.msra.mxu0 %v729
      %773 = vmatprep.subr.bf16.mxu0 %v733
      %774 = vmatpush1.bf16.msra.mxu0 %v732
      %775 = vmatprep.subr.bf16.mxu0 0
      %776 = vmatpush1.bf16.msra.mxu0 0
      %777 = vmatprep.subr.bf16.mxu0 0
      %778 = vmatpush1.bf16.msra.mxu0 0
      %779 = vmatprep.subr.bf16.mxu0 0
      %780 = vmatpush1.bf16.msra.mxu0 0
      %781 = vmatprep.subr.bf16.mxu0 0
      %782 = vmatpush1.bf16.msra.mxu0 0
      %783 = vmatprep.subr.bf16.mxu0 0
      %784 = vmatpush1.bf16.msra.mxu0 0
      %785 = vmatprep.subr.bf16.mxu0 0
      %786 = vmatpush1.bf16.msra.mxu0 0
      %787 = vmatprep.subr.bf16.mxu0 0
      %788 = vmatpush1.bf16.msra.mxu0 0
      %789 = vmatprep.subr.bf16.mxu0 0
      %790 = vmatpush1.bf16.msra.mxu0 0
      %791 = vmatprep.mubr.bf16.mxu0 0
      %792 = vmatmul.mubr.bf16.gmra.mrb[0].mxu0 %v580
      %v793 = vpop.f32.mrb[0].mxu0
      %v794 = vadd.f32 %v619, %v793
      %v795 = vpop.f32.mrb[0].mxu0
      %v796 = vadd.f32 %v623, %v795
      %v797 = vpop.f32.mrb[0].mxu0
      %v798 = vadd.f32 %v619, %v797
      %v799 = vpop.f32.mrb[0].mxu0
      %v800 = vadd.f32 %v623, %v799
      %801 = vmatprep.mubr.bf16.mxu0 0
      %802 = vmatmul.mubr.bf16.gmra.mrb[0].mxu0 %v581
      %v803 = vpop.f32.mrb[0].mxu0
      %v804 = vadd.f32 %v619, %v803
      %v805 = vpop.f32.mrb[0].mxu0
      %v806 = vadd.f32 %v623, %v805
      %v807 = vpop.f32.mrb[0].mxu0
      %v808 = vadd.f32 %v619, %v807
      %v809 = vpop.f32.mrb[0].mxu0
      %v810 = vadd.f32 %v623, %v809
      %811 = vdwg.mxu0
      %812 = vmatprep.subr.bf16.mxu0 0
      %813 = vmatpush1.bf16.msra.mxu0 %v713
      %814 = vmatprep.subr.bf16.mxu0 0
      %815 = vmatpush1.bf16.msra.mxu0 %v716
      %816 = vmatprep.subr.bf16.mxu0 0
      %817 = vmatpush1.bf16.msra.mxu0 %v719
      %818 = vmatprep.subr.bf16.mxu0 0
      %819 = vmatpush1.bf16.msra.mxu0 %v722
      %820 = vmatprep.subr.bf16.mxu0 0
      %821 = vmatpush1.bf16.msra.mxu0 %v725
      %822 = vmatprep.subr.bf16.mxu0 0
      %823 = vmatpush1.bf16.msra.mxu0 %v728
      %824 = vmatprep.subr.bf16.mxu0 0
      %825 = vmatpush1.bf16.msra.mxu0 %v731
      %826 = vmatprep.subr.bf16.mxu0 0
      %827 = vmatpush1.bf16.msra.mxu0 %v734
      %828 = vmatprep.subr.bf16.mxu0 0
      %829 = vmatpush1.bf16.msra.mxu0 0
      %830 = vmatprep.subr.bf16.mxu0 0
      %831 = vmatpush1.bf16.msra.mxu0 0
      %832 = vmatprep.subr.bf16.mxu0 0
      %833 = vmatpush1.bf16.msra.mxu0 0
      %834 = vmatprep.subr.bf16.mxu0 0
      %835 = vmatpush1.bf16.msra.mxu0 0
      %836 = vmatprep.subr.bf16.mxu0 0
      %837 = vmatpush1.bf16.msra.mxu0 0
      %838 = vmatprep.subr.bf16.mxu0 0
      %839 = vmatpush1.bf16.msra.mxu0 0
      %840 = vmatprep.subr.bf16.mxu0 0
      %841 = vmatpush1.bf16.msra.mxu0 0
      %842 = vmatprep.subr.bf16.mxu0 0
      %843 = vmatpush1.bf16.msra.mxu0 0
      %844 = vmatprep.mubr.bf16.mxu0 0
      %845 = vmatmul.mubr.bf16.gmra.mrb[0].mxu0 %v580
      %v846 = vpop.f32.mrb[0].mxu0
      %v847 = vadd.f32 %v627, %v846
      %v848 = vpop.f32.mrb[0].mxu0
      %v849 = vpop.f32.mrb[0].mxu0
      %v850 = vadd.f32 %v627, %v849
      %v851 = vpop.f32.mrb[0].mxu0
      %852 = vmatprep.mubr.bf16.mxu0 0
      %853 = vmatmul.mubr.bf16.gmra.mrb[0].mxu0 %v581
      %v854 = vpop.f32.mrb[0].mxu0
      %v855 = vadd.f32 %v627, %v854
      %v856 = vpop.f32.mrb[0].mxu0
      %v857 = vpop.f32.mrb[0].mxu0
      %v858 = vadd.f32 %v627, %v857
      %v859 = vpop.f32.mrb[0].mxu0
      %860 = vdwg.mxu0
      %v861 = vld [vmem:[%s452] sm:$0xf]
      %v862 = vld [vmem:[%s452 + $0x4] sm:$0xf]
      %v863 = vld [vmem:[%s452 + $0x8] sm:$0xf]
      %v864 = vld [vmem:[%s452 + $0xc] sm:$0xf]
      %v865 = vld [vmem:[%s6] sm:$0xff]
      %v866 = vld [vmem:[%s6 + $0x8] sm:$0xff]
      %v867 = vld [vmem:[%s6 + $0x10] sm:$0xff]
      %v868 = vld [vmem:[%s6 + $0x18] sm:$0xff]
      %v869 = vld [vmem:[%s6 + $0x20] sm:$0xff]
      %v870 = vld [vmem:[%s6 + $0x28] sm:$0xff]
      %v871 = vld [vmem:[%s6 + $0x30] sm:$0xff]
      %v872 = vld [vmem:[%s6 + $0x38] sm:$0xff]
      %v873 = vpack.c.bf16 %v798, %v794
      %v874 = vpack.c.bf16 %v800, %v796
      %v875 = vpack.c.bf16 %v850, %v847
      %v876 = vpack.c.bf16 %v808, %v804
      %v877 = vpack.c.bf16 %v810, %v806
      %v878 = vpack.c.bf16 %v858, %v855
      %v879 = vld [vmem:[%s7] sm:$0xff]
      %v880 = vld [vmem:[%s7 + $0x8] sm:$0xff]
      %v881 = vld [vmem:[%s7 + $0x10] sm:$0xff]
      %v882 = vld [vmem:[%s7 + $0x18] sm:$0xff]
      %v883 = vld [vmem:[%s7 + $0x20] sm:$0xff]
      %v884 = vld [vmem:[%s7 + $0x28] sm:$0xff]
      %v885 = vld [vmem:[%s7 + $0x30] sm:$0xff]
      %v886 = vld [vmem:[%s7 + $0x38] sm:$0xff]
      %v887 = vld [vmem:[%s7 + $0x40] sm:$0xff]
      %v888 = vld [vmem:[%s7 + $0x48] sm:$0xff]
      %v889 = vld [vmem:[%s7 + $0x50] sm:$0xff]
      %v890 = vld [vmem:[%s7 + $0x58] sm:$0xff]
      %v891 = vld [vmem:[%s7 + $0x60] sm:$0xff]
      %v892 = vld [vmem:[%s7 + $0x68] sm:$0xff]
      %v893 = vld [vmem:[%s7 + $0x70] sm:$0xff]
      %v894 = vld [vmem:[%s7 + $0x78] sm:$0xff]
      %v895 = vld [vmem:[%s7 + $0x80] sm:$0xff]
      %v896 = vld [vmem:[%s7 + $0x88] sm:$0xff]
      %v897 = vld [vmem:[%s7 + $0x90] sm:$0xff]
      %v898 = vld [vmem:[%s7 + $0x98] sm:$0xff]
      %v899 = vld [vmem:[%s7 + $0xa0] sm:$0xff]
      %v900 = vld [vmem:[%s7 + $0xa8] sm:$0xff]
      %v901 = vld [vmem:[%s7 + $0xb0] sm:$0xff]
      %v902 = vld [vmem:[%s7 + $0xb8] sm:$0xff]
      %v903 = vld [vmem:[%s7 + $0xc0] sm:$0xff]
      %v904 = vld [vmem:[%s7 + $0xc8] sm:$0xff]
      %v905 = vld [vmem:[%s7 + $0xd0] sm:$0xff]
      %v906 = vld [vmem:[%s7 + $0xd8] sm:$0xff]
      %v907 = vld [vmem:[%s7 + $0xe0] sm:$0xff]
      %v908 = vld [vmem:[%s7 + $0xe8] sm:$0xff]
      %v909 = vld [vmem:[%s7 + $0xf0] sm:$0xff]
      %v910 = vld [vmem:[%s7 + $0xf8] sm:$0xff]
      %v911 = vld [vmem:[%s7 + $0x100] sm:$0xff]
      %v912 = vld [vmem:[%s7 + $0x108] sm:$0xff]
      %v913 = vld [vmem:[%s7 + $0x110] sm:$0xff]
      %v914 = vld [vmem:[%s7 + $0x118] sm:$0xff]
      %v915 = vld [vmem:[%s7 + $0x120] sm:$0xff]
      %v916 = vld [vmem:[%s7 + $0x128] sm:$0xff]
      %v917 = vld [vmem:[%s7 + $0x130] sm:$0xff]
      %v918 = vld [vmem:[%s7 + $0x138] sm:$0xff]
      %v959 = vunpack.c.l.b16 %v879
      %v960 = vunpack.c.h.b16 %v879
      %v961 = vunpack.c.l.b16 %v880
      %v962 = vunpack.c.h.b16 %v880
      %v963 = vunpack.c.l.b16 %v881
      %v964 = vunpack.c.h.b16 %v881
      %v965 = vunpack.c.l.b16 %v882
      %v966 = vunpack.c.h.b16 %v882
      %v967 = vunpack.c.l.b16 %v883
      %v968 = vunpack.c.h.b16 %v883
      %v969 = vunpack.c.l.b16 %v884
      %v970 = vunpack.c.h.b16 %v884
      %v971 = vunpack.c.l.b16 %v885
      %v972 = vunpack.c.h.b16 %v885
      %v973 = vunpack.c.l.b16 %v886
      %v974 = vunpack.c.h.b16 %v886
      %v975 = vunpack.c.l.b16 %v887
      %v976 = vunpack.c.h.b16 %v887
      %v977 = vunpack.c.l.b16 %v888
      %v978 = vunpack.c.h.b16 %v888
      %v979 = vunpack.c.l.b16 %v889
      %v980 = vunpack.c.h.b16 %v889
      %v981 = vunpack.c.l.b16 %v890
      %v982 = vunpack.c.h.b16 %v890
      %v983 = vunpack.c.l.b16 %v891
      %v984 = vunpack.c.h.b16 %v891
      %v985 = vunpack.c.l.b16 %v892
      %v986 = vunpack.c.h.b16 %v892
      %v987 = vunpack.c.l.b16 %v893
      %v988 = vunpack.c.h.b16 %v893
      %v989 = vunpack.c.l.b16 %v894
      %v990 = vunpack.c.h.b16 %v894
      %v991 = vunpack.c.l.b16 %v895
      %v992 = vunpack.c.h.b16 %v895
      %v993 = vunpack.c.l.b16 %v896
      %v994 = vunpack.c.h.b16 %v896
      %v995 = vunpack.c.l.b16 %v897
      %v996 = vunpack.c.h.b16 %v897
      %v997 = vunpack.c.l.b16 %v898
      %v998 = vunpack.c.h.b16 %v898
      %v999 = vunpack.c.l.b16 %v899
      %v1000 = vunpack.c.h.b16 %v899
      %v1001 = vunpack.c.l.b16 %v900
      %v1002 = vunpack.c.h.b16 %v900
      %v1003 = vunpack.c.l.b16 %v901
      %v1004 = vunpack.c.h.b16 %v901
      %v1005 = vunpack.c.l.b16 %v902
      %v1006 = vunpack.c.h.b16 %v902
      %v1007 = vunpack.c.l.b16 %v903
      %v1008 = vunpack.c.h.b16 %v903
      %v1009 = vunpack.c.l.b16 %v904
      %v1010 = vunpack.c.h.b16 %v904
      %v1011 = vunpack.c.l.b16 %v905
      %v1012 = vunpack.c.h.b16 %v905
      %v1013 = vunpack.c.l.b16 %v906
      %v1014 = vunpack.c.h.b16 %v906
      %v1015 = vunpack.c.l.b16 %v907
      %v1016 = vunpack.c.h.b16 %v907
      %v1017 = vunpack.c.l.b16 %v908
      %v1018 = vunpack.c.h.b16 %v908
      %v1019 = vunpack.c.l.b16 %v909
      %v1020 = vunpack.c.h.b16 %v909
      %v1021 = vunpack.c.l.b16 %v910
      %v1022 = vunpack.c.h.b16 %v910
      %v1023 = vunpack.c.l.b16 %v911
      %v1024 = vunpack.c.h.b16 %v911
      %v1025 = vunpack.c.l.b16 %v912
      %v1026 = vunpack.c.h.b16 %v912
      %v1027 = vunpack.c.l.b16 %v913
      %v1028 = vunpack.c.h.b16 %v913
      %v1029 = vunpack.c.l.b16 %v914
      %v1030 = vunpack.c.h.b16 %v914
      %v1031 = vunpack.c.l.b16 %v915
      %v1032 = vunpack.c.h.b16 %v915
      %v1033 = vunpack.c.l.b16 %v916
      %v1034 = vunpack.c.h.b16 %v916
      %v1035 = vunpack.c.l.b16 %v917
      %v1036 = vunpack.c.h.b16 %v917
      %v1037 = vunpack.c.l.b16 %v918
      %v1038 = vunpack.c.h.b16 %v918
      %v1039 = vpack.c.b16 %v961, %v959
      %v1040 = vpack.c.b16 %v962, %v960
      %v1041 = vpack.c.b16 %v965, %v963
      %v1042 = vpack.c.b16 %v966, %v964
      %v1043 = vpack.c.b16 %v969, %v967
      %v1044 = vpack.c.b16 %v970, %v968
      %v1045 = vpack.c.b16 %v973, %v971
      %v1046 = vpack.c.b16 %v974, %v972
      %v1047 = vpack.c.b16 %v977, %v975
      %v1048 = vpack.c.b16 %v978, %v976
      %v1049 = vpack.c.b16 %v981, %v979
      %v1050 = vpack.c.b16 %v982, %v980
      %v1051 = vpack.c.b16 %v985, %v983
      %v1052 = vpack.c.b16 %v986, %v984
      %v1053 = vpack.c.b16 %v989, %v987
      %v1054 = vpack.c.b16 %v990, %v988
      %v1055 = vpack.c.b16 %v993, %v991
      %v1056 = vpack.c.b16 %v994, %v992
      %v1057 = vpack.c.b16 %v997, %v995
      %v1058 = vpack.c.b16 %v998, %v996
      %v1059 = vpack.c.b16 %v1001, %v999
      %v1060 = vpack.c.b16 %v1002, %v1000
      %v1061 = vpack.c.b16 %v1005, %v1003
      %v1062 = vpack.c.b16 %v1006, %v1004
      %v1063 = vpack.c.b16 %v1009, %v1007
      %v1064 = vpack.c.b16 %v1010, %v1008
      %v1065 = vpack.c.b16 %v1013, %v1011
      %v1066 = vpack.c.b16 %v1014, %v1012
      %v1067 = vpack.c.b16 %v1017, %v1015
      %v1068 = vpack.c.b16 %v1018, %v1016
      %v1069 = vpack.c.b16 %v1021, %v1019
      %v1070 = vpack.c.b16 %v1022, %v1020
      %v1071 = vpack.c.b16 %v1025, %v1023
      %v1072 = vpack.c.b16 %v1026, %v1024
      %v1073 = vpack.c.b16 %v1029, %v1027
      %v1074 = vpack.c.b16 %v1030, %v1028
      %v1075 = vpack.c.b16 %v1033, %v1031
      %v1076 = vpack.c.b16 %v1034, %v1032
      %v1077 = vpack.c.b16 %v1037, %v1035
      %v1078 = vpack.c.b16 %v1038, %v1036
      %vm1119 = vcmask 523264
      %v1121 = vsel %vm1119, %v875, 0
      %v1124 = vsel %vm1119, %v878, 0
      %1126 = vmatprep.subr.bf16.mxu0 %v1040
      %1127 = vmatpush1.bf16.msra.mxu0 %v1039
      %1128 = vmatprep.subr.bf16.mxu0 %v1042
      %1129 = vmatpush1.bf16.msra.mxu0 %v1041
      %1130 = vmatprep.subr.bf16.mxu0 %v1044
      %1131 = vmatpush1.bf16.msra.mxu0 %v1043
      %1132 = vmatprep.subr.bf16.mxu0 %v1046
      %1133 = vmatpush1.bf16.msra.mxu0 %v1045
      %1134 = vmatprep.subr.bf16.mxu0 %v1048
      %1135 = vmatpush1.bf16.msra.mxu0 %v1047
      %1136 = vmatprep.subr.bf16.mxu0 %v1050
      %1137 = vmatpush1.bf16.msra.mxu0 %v1049
      %1138 = vmatprep.subr.bf16.mxu0 %v1052
      %1139 = vmatpush1.bf16.msra.mxu0 %v1051
      %1140 = vmatprep.subr.bf16.mxu0 %v1054
      %1141 = vmatpush1.bf16.msra.mxu0 %v1053
      %1142 = vmatprep.subr.bf16.mxu0 %v1056
      %1143 = vmatpush1.bf16.msra.mxu0 %v1055
      %1144 = vmatprep.subr.bf16.mxu0 %v1058
      %1145 = vmatpush1.bf16.msra.mxu0 %v1057
      %1146 = vmatprep.subr.bf16.mxu0 %v1060
      %1147 = vmatpush1.bf16.msra.mxu0 %v1059
      %1148 = vmatprep.subr.bf16.mxu0 %v1062
      %1149 = vmatpush1.bf16.msra.mxu0 %v1061
      %1150 = vmatprep.subr.bf16.mxu0 %v1064
      %1151 = vmatpush1.bf16.msra.mxu0 %v1063
      %1152 = vmatprep.subr.bf16.mxu0 %v1066
      %1153 = vmatpush1.bf16.msra.mxu0 %v1065
      %1154 = vmatprep.subr.bf16.mxu0 %v1068
      %1155 = vmatpush1.bf16.msra.mxu0 %v1067
      %1156 = vmatprep.subr.bf16.mxu0 %v1070
      %1157 = vmatpush1.bf16.msra.mxu0 %v1069
      %1158 = vmatprep.mubr.bf16.mxu0 %v874
      %1159 = vmatmul.mubr.bf16.gmra.mrb[0].mxu0 %v873
      %v1160 = vpop.f32.mrb[0].mxu0
      %v1161 = vadd.f32 0.0, %v1160
      %v1162 = vpop.f32.mrb[0].mxu0
      %v1163 = vadd.f32 0.0, %v1162
      %v1164 = vpop.f32.mrb[0].mxu0
      %v1165 = vadd.f32 0.0, %v1164
      %v1166 = vpop.f32.mrb[0].mxu0
      %v1167 = vadd.f32 0.0, %v1166
      %1168 = vmatprep.mubr.bf16.mxu0 %v877
      %1169 = vmatmul.mubr.bf16.gmra.mrb[0].mxu0 %v876
      %v1170 = vpop.f32.mrb[0].mxu0
      %v1171 = vadd.f32 0.0, %v1170
      %v1172 = vpop.f32.mrb[0].mxu0
      %v1173 = vadd.f32 0.0, %v1172
      %v1174 = vpop.f32.mrb[0].mxu0
      %v1175 = vadd.f32 0.0, %v1174
      %v1176 = vpop.f32.mrb[0].mxu0
      %v1177 = vadd.f32 0.0, %v1176
      %1178 = vdwg.mxu0
      %1179 = vmatprep.subr.bf16.mxu0 %v1072
      %1180 = vmatpush1.bf16.msra.mxu0 %v1071
      %1181 = vmatprep.subr.bf16.mxu0 %v1074
      %1182 = vmatpush1.bf16.msra.mxu0 %v1073
      %1183 = vmatprep.subr.bf16.mxu0 %v1076
      %1184 = vmatpush1.bf16.msra.mxu0 %v1075
      %1185 = vmatprep.subr.bf16.mxu0 %v1078
      %1186 = vmatpush1.bf16.msra.mxu0 %v1077
      %1187 = vmatprep.subr.bf16.mxu0 0
      %1188 = vmatpush1.bf16.msra.mxu0 0
      %1189 = vmatprep.subr.bf16.mxu0 0
      %1190 = vmatpush1.bf16.msra.mxu0 0
      %1191 = vmatprep.subr.bf16.mxu0 0
      %1192 = vmatpush1.bf16.msra.mxu0 0
      %1193 = vmatprep.subr.bf16.mxu0 0
      %1194 = vmatpush1.bf16.msra.mxu0 0
      %1195 = vmatprep.subr.bf16.mxu0 0
      %1196 = vmatpush1.bf16.msra.mxu0 0
      %1197 = vmatprep.subr.bf16.mxu0 0
      %1198 = vmatpush1.bf16.msra.mxu0 0
      %1199 = vmatprep.subr.bf16.mxu0 0
      %1200 = vmatpush1.bf16.msra.mxu0 0
      %1201 = vmatprep.subr.bf16.mxu0 0
      %1202 = vmatpush1.bf16.msra.mxu0 0
      %1203 = vmatprep.subr.bf16.mxu0 0
      %1204 = vmatpush1.bf16.msra.mxu0 0
      %1205 = vmatprep.subr.bf16.mxu0 0
      %1206 = vmatpush1.bf16.msra.mxu0 0
      %1207 = vmatprep.subr.bf16.mxu0 0
      %1208 = vmatpush1.bf16.msra.mxu0 0
      %1209 = vmatprep.subr.bf16.mxu0 0
      %1210 = vmatpush1.bf16.msra.mxu0 0
      %1211 = vmatprep.mubr.bf16.mxu0 0
      %1212 = vmatmul.mubr.bf16.gmra.mrb[0].mxu0 %v1121
      %v1213 = vpop.f32.mrb[0].mxu0
      %v1214 = vadd.f32 %v1161, %v1213
      %v1215 = vpop.f32.mrb[0].mxu0
      %v1216 = vadd.f32 %v1163, %v1215
      %v1217 = vpop.f32.mrb[0].mxu0
      %v1218 = vadd.f32 %v1165, %v1217
      %v1219 = vpop.f32.mrb[0].mxu0
      %v1220 = vadd.f32 %v1167, %v1219
      %1221 = vmatprep.mubr.bf16.mxu0 0
      %1222 = vmatmul.mubr.bf16.gmra.mrb[0].mxu0 %v1124
      %v1223 = vpop.f32.mrb[0].mxu0
      %v1224 = vadd.f32 %v1171, %v1223
      %v1225 = vpop.f32.mrb[0].mxu0
      %v1226 = vadd.f32 %v1173, %v1225
      %v1227 = vpop.f32.mrb[0].mxu0
      %v1228 = vadd.f32 %v1175, %v1227
      %v1229 = vpop.f32.mrb[0].mxu0
      %v1230 = vadd.f32 %v1177, %v1229
      %1231 = vdwg.mxu0
      %v1236 = vunpack.c.l.b16 %v861
      %v1237 = vunpack.c.l.b16 %v862
      %v1238 = vunpack.c.l.b16 %v863
      %v1239 = vunpack.c.l.b16 %v864
      %v1240 = vpack.c.b16 %v1237, %v1236
      %v1241 = vpack.c.b16 %v1239, %v1238
      %v1250 = vunpack.c.l.b16 %v865
      %v1251 = vunpack.c.h.b16 %v865
      %v1252 = vunpack.c.l.b16 %v866
      %v1253 = vunpack.c.h.b16 %v866
      %v1254 = vunpack.c.l.b16 %v867
      %v1255 = vunpack.c.h.b16 %v867
      %v1256 = vunpack.c.l.b16 %v868
      %v1257 = vunpack.c.h.b16 %v868
      %v1258 = vunpack.c.l.b16 %v869
      %v1259 = vunpack.c.h.b16 %v869
      %v1260 = vunpack.c.l.b16 %v870
      %v1261 = vunpack.c.h.b16 %v870
      %v1262 = vunpack.c.l.b16 %v871
      %v1263 = vunpack.c.h.b16 %v871
      %v1264 = vunpack.c.l.b16 %v872
      %v1265 = vunpack.c.h.b16 %v872
      %v1266 = vpack.c.b16 %v1252, %v1250
      %v1267 = vpack.c.b16 %v1253, %v1251
      %v1268 = vpack.c.b16 %v1256, %v1254
      %v1269 = vpack.c.b16 %v1257, %v1255
      %v1270 = vpack.c.b16 %v1260, %v1258
      %v1271 = vpack.c.b16 %v1261, %v1259
      %v1272 = vpack.c.b16 %v1264, %v1262
      %v1273 = vpack.c.b16 %v1265, %v1263
      %v1283 = vsel %vm1119, %v1240, 0
      %v1286 = vsel %vm1119, %v1241, 0
      %1288 = vmatprep.subr.bf16.mxu0 %v1267
      %1289 = vmatpush1.bf16.msra.mxu0 %v1266
      %1290 = vmatprep.subr.bf16.mxu0 %v1269
      %1291 = vmatpush1.bf16.msra.mxu0 %v1268
      %1292 = vmatprep.subr.bf16.mxu0 %v1271
      %1293 = vmatpush1.bf16.msra.mxu0 %v1270
      %1294 = vmatprep.subr.bf16.mxu0 %v1273
      %1295 = vmatpush1.bf16.msra.mxu0 %v1272
      %1296 = vmatprep.subr.bf16.mxu0 0
      %1297 = vmatpush1.bf16.msra.mxu0 0
      %1298 = vmatprep.subr.bf16.mxu0 0
      %1299 = vmatpush1.bf16.msra.mxu0 0
      %1300 = vmatprep.subr.bf16.mxu0 0
      %1301 = vmatpush1.bf16.msra.mxu0 0
      %1302 = vmatprep.subr.bf16.mxu0 0
      %1303 = vmatpush1.bf16.msra.mxu0 0
      %1304 = vmatprep.subr.bf16.mxu0 0
      %1305 = vmatpush1.bf16.msra.mxu0 0
      %1306 = vmatprep.subr.bf16.mxu0 0
      %1307 = vmatpush1.bf16.msra.mxu0 0
      %1308 = vmatprep.subr.bf16.mxu0 0
      %1309 = vmatpush1.bf16.msra.mxu0 0
      %1310 = vmatprep.subr.bf16.mxu0 0
      %1311 = vmatpush1.bf16.msra.mxu0 0
      %1312 = vmatprep.subr.bf16.mxu0 0
      %1313 = vmatpush1.bf16.msra.mxu0 0
      %1314 = vmatprep.subr.bf16.mxu0 0
      %1315 = vmatpush1.bf16.msra.mxu0 0
      %1316 = vmatprep.subr.bf16.mxu0 0
      %1317 = vmatpush1.bf16.msra.mxu0 0
      %1318 = vmatprep.subr.bf16.mxu0 0
      %1319 = vmatpush1.bf16.msra.mxu0 0
      %1320 = vmatprep.mubr.bf16.mxu0 0
      %1321 = vmatmul.mubr.bf16.gmra.mrb[0].mxu0 %v1283
      %v1322 = vpop.f32.mrb[0].mxu0
      %v1323 = vadd.f32 %v1214, %v1322
      %v1324 = vpop.f32.mrb[0].mxu0
      %v1325 = vadd.f32 %v1216, %v1324
      %v1326 = vpop.f32.mrb[0].mxu0
      %v1327 = vadd.f32 %v1218, %v1326
      %v1328 = vpop.f32.mrb[0].mxu0
      %v1329 = vadd.f32 %v1220, %v1328
      %1330 = vmatprep.mubr.bf16.mxu0 0
      %1331 = vmatmul.mubr.bf16.gmra.mrb[0].mxu0 %v1286
      %v1332 = vpop.f32.mrb[0].mxu0
      %v1333 = vadd.f32 %v1224, %v1332
      %v1334 = vpop.f32.mrb[0].mxu0
      %v1335 = vadd.f32 %v1226, %v1334
      %v1336 = vpop.f32.mrb[0].mxu0
      %v1337 = vadd.f32 %v1228, %v1336
      %v1338 = vpop.f32.mrb[0].mxu0
      %v1339 = vadd.f32 %v1230, %v1338
      %1340 = vdwg.mxu0
      %v1341 = vld [vmem:[%s8] sm:$0x3]
      %v1343 = vlaneseq
      %v1344 = vshrl.u32 %v1343, 7
      %v1345 = vsub.s32 0, %v1344
      %v1346 = vrot.slane %v1341, %v1345
      %v1347 = vlaneseq
      %v1348 = vshrl.u32 %v1347, 7
      %v1349 = vsub.s32 1, %v1348
      %v1350 = vrot.slane %v1341, %v1349
      %v1353 = vadd.f32 %v1323, %v1346
      %v1354 = vadd.f32 %v1325, %v1350
      %v1355 = vadd.f32 %v1327, %v1346
      %v1356 = vadd.f32 %v1329, %v1350
      %v1357 = vadd.f32 %v1333, %v1346
      %v1358 = vadd.f32 %v1335, %v1350
      %v1359 = vadd.f32 %v1337, %v1346
      %v1360 = vadd.f32 %v1339, %v1350
      %v1361 = vxor.u32 %v1353, 2147483648
      %v1362 = vxor.u32 %v1354, 2147483648
      %v1363 = vxor.u32 %v1355, 2147483648
      %v1364 = vxor.u32 %v1356, 2147483648
      %v1365 = vxor.u32 %v1357, 2147483648
      %v1366 = vxor.u32 %v1358, 2147483648
      %v1367 = vxor.u32 %v1359, 2147483648
      %v1368 = vxor.u32 %v1360, 2147483648
      %v1369 = vmul.f32 %v1361, 1.442695
      %v1370 = vpow.pop %v1369
      %v1371 = vmul.f32 %v1362, 1.442695
      %v1372 = vpow.pop %v1371
      %v1373 = vmul.f32 %v1363, 1.442695
      %v1374 = vpow.pop %v1373
      %v1375 = vmul.f32 %v1364, 1.442695
      %v1376 = vpow.pop %v1375
      %v1377 = vmul.f32 %v1365, 1.442695
      %v1378 = vpow.pop %v1377
      %v1379 = vmul.f32 %v1366, 1.442695
      %v1380 = vpow.pop %v1379
      %v1381 = vmul.f32 %v1367, 1.442695
      %v1382 = vpow.pop %v1381
      %v1383 = vmul.f32 %v1368, 1.442695
      %v1384 = vpow.pop %v1383
      %v1385 = vadd.f32 %v1370, 1.0
      %v1386 = vadd.f32 %v1372, 1.0
      %v1387 = vadd.f32 %v1374, 1.0
      %v1388 = vadd.f32 %v1376, 1.0
      %v1389 = vadd.f32 %v1378, 1.0
      %v1390 = vadd.f32 %v1380, 1.0
      %v1391 = vadd.f32 %v1382, 1.0
      %v1392 = vadd.f32 %v1384, 1.0
      %v1393 = vrcp.pop %v1385
      %v1394 = vmul.f32 1.0, %v1393
      %v1395 = vrcp.pop %v1386
      %v1396 = vmul.f32 1.0, %v1395
      %v1397 = vrcp.pop %v1387
      %v1398 = vmul.f32 1.0, %v1397
      %v1399 = vrcp.pop %v1388
      %v1400 = vmul.f32 1.0, %v1399
      %v1401 = vrcp.pop %v1389
      %v1402 = vmul.f32 1.0, %v1401
      %v1403 = vrcp.pop %v1390
      %v1404 = vmul.f32 1.0, %v1403
      %v1405 = vrcp.pop %v1391
      %v1406 = vmul.f32 1.0, %v1405
      %v1407 = vrcp.pop %v1392
      %v1408 = vmul.f32 1.0, %v1407
      %v1409 = vmul.f32 %v1353, %v1394
      %v1410 = vmul.f32 %v1354, %v1396
      %v1411 = vmul.f32 %v1355, %v1398
      %v1412 = vmul.f32 %v1356, %v1400
      %v1413 = vmul.f32 %v1357, %v1402
      %v1414 = vmul.f32 %v1358, %v1404
      %v1415 = vmul.f32 %v1359, %v1406
      %v1416 = vmul.f32 %v1360, %v1408
      %v1417 = vpack.c.bf16 %v1411, %v1409
      %v1418 = vpack.c.bf16 %v1412, %v1410
      %v1419 = vpack.c.bf16 %v1415, %v1413
      %v1420 = vpack.c.bf16 %v1416, %v1414
      %v1421 = vld [vmem:[%s9] sm:$0xff]
      %v1422 = vld [vmem:[%s9 + $0x8] sm:$0xff]
      %v1423 = vld [vmem:[%s9 + $0x10] sm:$0xff]
      %v1424 = vld [vmem:[%s9 + $0x18] sm:$0xff]
      %v1425 = vld [vmem:[%s9 + $0x20] sm:$0xff]
      %v1426 = vld [vmem:[%s9 + $0x28] sm:$0xff]
      %v1427 = vld [vmem:[%s9 + $0x30] sm:$0xff]
      %v1428 = vld [vmem:[%s9 + $0x38] sm:$0xff]
      %v1429 = vld [vmem:[%s9 + $0x40] sm:$0xff]
      %v1430 = vld [vmem:[%s9 + $0x48] sm:$0xff]
      %v1431 = vld [vmem:[%s9 + $0x50] sm:$0xff]
      %v1432 = vld [vmem:[%s9 + $0x58] sm:$0xff]
      %v1433 = vld [vmem:[%s9 + $0x60] sm:$0xff]
      %v1434 = vld [vmem:[%s9 + $0x68] sm:$0xff]
      %v1435 = vld [vmem:[%s9 + $0x70] sm:$0xff]
      %v1436 = vld [vmem:[%s9 + $0x78] sm:$0xff]
      %v1437 = vld [vmem:[%s9 + $0x80] sm:$0xff]
      %v1438 = vld [vmem:[%s9 + $0x88] sm:$0xff]
      %v1439 = vld [vmem:[%s9 + $0x90] sm:$0xff]
      %v1440 = vld [vmem:[%s9 + $0x98] sm:$0xff]
      %v1441 = vld [vmem:[%s9 + $0xa0] sm:$0xff]
      %v1442 = vld [vmem:[%s9 + $0xa8] sm:$0xff]
      %v1443 = vld [vmem:[%s9 + $0xb0] sm:$0xff]
      %v1444 = vld [vmem:[%s9 + $0xb8] sm:$0xff]
      %v1445 = vld [vmem:[%s9 + $0xc0] sm:$0xff]
      %v1446 = vld [vmem:[%s9 + $0xc8] sm:$0xff]
      %v1447 = vld [vmem:[%s9 + $0xd0] sm:$0xff]
      %v1448 = vld [vmem:[%s9 + $0xd8] sm:$0xff]
      %v1449 = vld [vmem:[%s9 + $0xe0] sm:$0xff]
      %v1450 = vld [vmem:[%s9 + $0xe8] sm:$0xff]
      %v1451 = vld [vmem:[%s9 + $0xf0] sm:$0xff]
      %v1452 = vld [vmem:[%s9 + $0xf8] sm:$0xff]
      %v1453 = vld [vmem:[%s10] sm:$0x3]
      %v1455 = vlaneseq
      %v1456 = vshrl.u32 %v1455, 7
      %v1457 = vsub.s32 0, %v1456
      %v1458 = vrot.slane %v1453, %v1457
      %v1459 = vlaneseq
      %v1460 = vshrl.u32 %v1459, 7
      %v1461 = vsub.s32 1, %v1460
      %v1462 = vrot.slane %v1453, %v1461
      %v1497 = vunpack.c.l.b16 %v1421
      %v1498 = vunpack.c.h.b16 %v1421
      %v1499 = vunpack.c.l.b16 %v1422
      %v1500 = vunpack.c.h.b16 %v1422
      %v1501 = vunpack.c.l.b16 %v1423
      %v1502 = vunpack.c.h.b16 %v1423
      %v1503 = vunpack.c.l.b16 %v1424
      %v1504 = vunpack.c.h.b16 %v1424
      %v1505 = vunpack.c.l.b16 %v1425
      %v1506 = vunpack.c.h.b16 %v1425
      %v1507 = vunpack.c.l.b16 %v1426
      %v1508 = vunpack.c.h.b16 %v1426
      %v1509 = vunpack.c.l.b16 %v1427
      %v1510 = vunpack.c.h.b16 %v1427
      %v1511 = vunpack.c.l.b16 %v1428
      %v1512 = vunpack.c.h.b16 %v1428
      %v1513 = vunpack.c.l.b16 %v1429
      %v1514 = vunpack.c.h.b16 %v1429
      %v1515 = vunpack.c.l.b16 %v1430
      %v1516 = vunpack.c.h.b16 %v1430
      %v1517 = vunpack.c.l.b16 %v1431
      %v1518 = vunpack.c.h.b16 %v1431
      %v1519 = vunpack.c.l.b16 %v1432
      %v1520 = vunpack.c.h.b16 %v1432
      %v1521 = vunpack.c.l.b16 %v1433
      %v1522 = vunpack.c.h.b16 %v1433
      %v1523 = vunpack.c.l.b16 %v1434
      %v1524 = vunpack.c.h.b16 %v1434
      %v1525 = vunpack.c.l.b16 %v1435
      %v1526 = vunpack.c.h.b16 %v1435
      %v1527 = vunpack.c.l.b16 %v1436
      %v1528 = vunpack.c.h.b16 %v1436
      %v1529 = vunpack.c.l.b16 %v1437
      %v1530 = vunpack.c.h.b16 %v1437
      %v1531 = vunpack.c.l.b16 %v1438
      %v1532 = vunpack.c.h.b16 %v1438
      %v1533 = vunpack.c.l.b16 %v1439
      %v1534 = vunpack.c.h.b16 %v1439
      %v1535 = vunpack.c.l.b16 %v1440
      %v1536 = vunpack.c.h.b16 %v1440
      %v1537 = vunpack.c.l.b16 %v1441
      %v1538 = vunpack.c.h.b16 %v1441
      %v1539 = vunpack.c.l.b16 %v1442
      %v1540 = vunpack.c.h.b16 %v1442
      %v1541 = vunpack.c.l.b16 %v1443
      %v1542 = vunpack.c.h.b16 %v1443
      %v1543 = vunpack.c.l.b16 %v1444
      %v1544 = vunpack.c.h.b16 %v1444
      %v1545 = vunpack.c.l.b16 %v1445
      %v1546 = vunpack.c.h.b16 %v1445
      %v1547 = vunpack.c.l.b16 %v1446
      %v1548 = vunpack.c.h.b16 %v1446
      %v1549 = vunpack.c.l.b16 %v1447
      %v1550 = vunpack.c.h.b16 %v1447
      %v1551 = vunpack.c.l.b16 %v1448
      %v1552 = vunpack.c.h.b16 %v1448
      %v1553 = vunpack.c.l.b16 %v1449
      %v1554 = vunpack.c.h.b16 %v1449
      %v1555 = vunpack.c.l.b16 %v1450
      %v1556 = vunpack.c.h.b16 %v1450
      %v1557 = vunpack.c.l.b16 %v1451
      %v1558 = vunpack.c.h.b16 %v1451
      %v1559 = vunpack.c.l.b16 %v1452
      %v1560 = vunpack.c.h.b16 %v1452
      %v1561 = vpack.c.b16 %v1499, %v1497
      %v1562 = vpack.c.b16 %v1500, %v1498
      %v1563 = vpack.c.b16 %v1503, %v1501
      %v1564 = vpack.c.b16 %v1504, %v1502
      %v1565 = vpack.c.b16 %v1507, %v1505
      %v1566 = vpack.c.b16 %v1508, %v1506
      %v1567 = vpack.c.b16 %v1511, %v1509
      %v1568 = vpack.c.b16 %v1512, %v1510
      %v1569 = vpack.c.b16 %v1515, %v1513
      %v1570 = vpack.c.b16 %v1516, %v1514
      %v1571 = vpack.c.b16 %v1519, %v1517
      %v1572 = vpack.c.b16 %v1520, %v1518
      %v1573 = vpack.c.b16 %v1523, %v1521
      %v1574 = vpack.c.b16 %v1524, %v1522
      %v1575 = vpack.c.b16 %v1527, %v1525
      %v1576 = vpack.c.b16 %v1528, %v1526
      %v1577 = vpack.c.b16 %v1531, %v1529
      %v1578 = vpack.c.b16 %v1532, %v1530
      %v1579 = vpack.c.b16 %v1535, %v1533
      %v1580 = vpack.c.b16 %v1536, %v1534
      %v1581 = vpack.c.b16 %v1539, %v1537
      %v1582 = vpack.c.b16 %v1540, %v1538
      %v1583 = vpack.c.b16 %v1543, %v1541
      %v1584 = vpack.c.b16 %v1544, %v1542
      %v1585 = vpack.c.b16 %v1547, %v1545
      %v1586 = vpack.c.b16 %v1548, %v1546
      %v1587 = vpack.c.b16 %v1551, %v1549
      %v1588 = vpack.c.b16 %v1552, %v1550
      %v1589 = vpack.c.b16 %v1555, %v1553
      %v1590 = vpack.c.b16 %v1556, %v1554
      %v1591 = vpack.c.b16 %v1559, %v1557
      %v1592 = vpack.c.b16 %v1560, %v1558
      %1625 = vmatprep.subr.bf16.mxu0 %v1562
      %1626 = vmatpush1.bf16.msra.mxu0 %v1561
      %1627 = vmatprep.subr.bf16.mxu0 %v1564
      %1628 = vmatpush1.bf16.msra.mxu0 %v1563
      %1629 = vmatprep.subr.bf16.mxu0 %v1566
      %1630 = vmatpush1.bf16.msra.mxu0 %v1565
      %1631 = vmatprep.subr.bf16.mxu0 %v1568
      %1632 = vmatpush1.bf16.msra.mxu0 %v1567
      %1633 = vmatprep.subr.bf16.mxu0 %v1570
      %1634 = vmatpush1.bf16.msra.mxu0 %v1569
      %1635 = vmatprep.subr.bf16.mxu0 %v1572
      %1636 = vmatpush1.bf16.msra.mxu0 %v1571
      %1637 = vmatprep.subr.bf16.mxu0 %v1574
      %1638 = vmatpush1.bf16.msra.mxu0 %v1573
      %1639 = vmatprep.subr.bf16.mxu0 %v1576
      %1640 = vmatpush1.bf16.msra.mxu0 %v1575
      %1641 = vmatprep.subr.bf16.mxu0 %v1578
      %1642 = vmatpush1.bf16.msra.mxu0 %v1577
      %1643 = vmatprep.subr.bf16.mxu0 %v1580
      %1644 = vmatpush1.bf16.msra.mxu0 %v1579
      %1645 = vmatprep.subr.bf16.mxu0 %v1582
      %1646 = vmatpush1.bf16.msra.mxu0 %v1581
      %1647 = vmatprep.subr.bf16.mxu0 %v1584
      %1648 = vmatpush1.bf16.msra.mxu0 %v1583
      %1649 = vmatprep.subr.bf16.mxu0 %v1586
      %1650 = vmatpush1.bf16.msra.mxu0 %v1585
      %1651 = vmatprep.subr.bf16.mxu0 %v1588
      %1652 = vmatpush1.bf16.msra.mxu0 %v1587
      %1653 = vmatprep.subr.bf16.mxu0 %v1590
      %1654 = vmatpush1.bf16.msra.mxu0 %v1589
      %1655 = vmatprep.subr.bf16.mxu0 %v1592
      %1656 = vmatpush1.bf16.msra.mxu0 %v1591
      %1657 = vmatprep.mubr.bf16.mxu0 %v1418
      %1658 = vmatmul.mubr.bf16.gmra.mrb[0].mxu0 %v1417
      %v1659 = vpop.f32.mrb[0].mxu0
      %v1660 = vadd.f32 %v1458, %v1659
      %v1661 = vpop.f32.mrb[0].mxu0
      %v1662 = vadd.f32 %v1462, %v1661
      %v1663 = vpop.f32.mrb[0].mxu0
      %v1664 = vadd.f32 %v1458, %v1663
      %v1665 = vpop.f32.mrb[0].mxu0
      %v1666 = vadd.f32 %v1462, %v1665
      %1667 = vmatprep.mubr.bf16.mxu0 %v1420
      %1668 = vmatmul.mubr.bf16.gmra.mrb[0].mxu0 %v1419
      %v1669 = vpop.f32.mrb[0].mxu0
      %v1670 = vadd.f32 %v1458, %v1669
      %v1671 = vpop.f32.mrb[0].mxu0
      %v1672 = vadd.f32 %v1462, %v1671
      %v1673 = vpop.f32.mrb[0].mxu0
      %v1674 = vadd.f32 %v1458, %v1673
      %v1675 = vpop.f32.mrb[0].mxu0
      %v1676 = vadd.f32 %v1462, %v1675
      %1677 = vdwg.mxu0
      %v1678 = vxor.u32 %v1660, 2147483648
      %v1679 = vxor.u32 %v1662, 2147483648
      %v1680 = vxor.u32 %v1664, 2147483648
      %v1681 = vxor.u32 %v1666, 2147483648
      %v1682 = vxor.u32 %v1670, 2147483648
      %v1683 = vxor.u32 %v1672, 2147483648
      %v1684 = vxor.u32 %v1674, 2147483648
      %v1685 = vxor.u32 %v1676, 2147483648
      %v1686 = vmul.f32 %v1678, 1.442695
      %v1687 = vpow.pop %v1686
      %v1688 = vmul.f32 %v1679, 1.442695
      %v1689 = vpow.pop %v1688
      %v1690 = vmul.f32 %v1680, 1.442695
      %v1691 = vpow.pop %v1690
      %v1692 = vmul.f32 %v1681, 1.442695
      %v1693 = vpow.pop %v1692
      %v1694 = vmul.f32 %v1682, 1.442695
      %v1695 = vpow.pop %v1694
      %v1696 = vmul.f32 %v1683, 1.442695
      %v1697 = vpow.pop %v1696
      %v1698 = vmul.f32 %v1684, 1.442695
      %v1699 = vpow.pop %v1698
      %v1700 = vmul.f32 %v1685, 1.442695
      %v1701 = vpow.pop %v1700
      %v1702 = vadd.f32 %v1687, 1.0
      %v1703 = vadd.f32 %v1689, 1.0
      %v1704 = vadd.f32 %v1691, 1.0
      %v1705 = vadd.f32 %v1693, 1.0
      %v1706 = vadd.f32 %v1695, 1.0
      %v1707 = vadd.f32 %v1697, 1.0
      %v1708 = vadd.f32 %v1699, 1.0
      %v1709 = vadd.f32 %v1701, 1.0
      %v1710 = vrcp.pop %v1702
      %v1711 = vmul.f32 1.0, %v1710
      %v1712 = vrcp.pop %v1703
      %v1713 = vmul.f32 1.0, %v1712
      %v1714 = vrcp.pop %v1704
      %v1715 = vmul.f32 1.0, %v1714
      %v1716 = vrcp.pop %v1705
      %v1717 = vmul.f32 1.0, %v1716
      %v1718 = vrcp.pop %v1706
      %v1719 = vmul.f32 1.0, %v1718
      %v1720 = vrcp.pop %v1707
      %v1721 = vmul.f32 1.0, %v1720
      %v1722 = vrcp.pop %v1708
      %v1723 = vmul.f32 1.0, %v1722
      %v1724 = vrcp.pop %v1709
      %v1725 = vmul.f32 1.0, %v1724
      %v1726 = vmul.f32 %v1660, %v1711
      %v1727 = vmul.f32 %v1662, %v1713
      %v1728 = vmul.f32 %v1664, %v1715
      %v1729 = vmul.f32 %v1666, %v1717
      %v1730 = vmul.f32 %v1670, %v1719
      %v1731 = vmul.f32 %v1672, %v1721
      %v1732 = vmul.f32 %v1674, %v1723
      %v1733 = vmul.f32 %v1676, %v1725
      %v1734 = vpack.c.bf16 %v1728, %v1726
      %v1735 = vpack.c.bf16 %v1729, %v1727
      %v1736 = vpack.c.bf16 %v1732, %v1730
      %v1737 = vpack.c.bf16 %v1733, %v1731
      %v1738 = vld [vmem:[%s11] sm:$0xf]
      %v1739 = vld [vmem:[%s11 + $0x4] sm:$0xf]
      %v1740 = vld [vmem:[%s11 + $0x8] sm:$0xf]
      %v1741 = vld [vmem:[%s11 + $0xc] sm:$0xf]
      %v1742 = vld [vmem:[%s11 + $0x10] sm:$0xf]
      %v1743 = vld [vmem:[%s11 + $0x14] sm:$0xf]
      %v1744 = vld [vmem:[%s11 + $0x18] sm:$0xf]
      %v1745 = vld [vmem:[%s11 + $0x1c] sm:$0xf]
      %v1746 = vld [vmem:[%s11 + $0x20] sm:$0xf]
      %v1747 = vld [vmem:[%s11 + $0x24] sm:$0xf]
      %v1748 = vld [vmem:[%s11 + $0x28] sm:$0xf]
      %v1749 = vld [vmem:[%s11 + $0x2c] sm:$0xf]
      %v1750 = vld [vmem:[%s11 + $0x30] sm:$0xf]
      %v1751 = vld [vmem:[%s11 + $0x34] sm:$0xf]
      %v1752 = vld [vmem:[%s11 + $0x38] sm:$0xf]
      %v1753 = vld [vmem:[%s11 + $0x3c] sm:$0xf]
      %v1754 = vld [vmem:[%s11 + $0x40] sm:$0xf]
      %v1755 = vld [vmem:[%s11 + $0x44] sm:$0xf]
      %v1756 = vld [vmem:[%s11 + $0x48] sm:$0xf]
      %v1757 = vld [vmem:[%s11 + $0x4c] sm:$0xf]
      %v1758 = vld [vmem:[%s11 + $0x50] sm:$0xf]
      %v1759 = vld [vmem:[%s11 + $0x54] sm:$0xf]
      %v1760 = vld [vmem:[%s11 + $0x58] sm:$0xf]
      %v1761 = vld [vmem:[%s11 + $0x5c] sm:$0xf]
      %v1762 = vld [vmem:[%s11 + $0x60] sm:$0xf]
      %v1763 = vld [vmem:[%s11 + $0x64] sm:$0xf]
      %v1764 = vld [vmem:[%s11 + $0x68] sm:$0xf]
      %v1765 = vld [vmem:[%s11 + $0x6c] sm:$0xf]
      %v1766 = vld [vmem:[%s11 + $0x70] sm:$0xf]
      %v1767 = vld [vmem:[%s11 + $0x74] sm:$0xf]
      %v1768 = vld [vmem:[%s11 + $0x78] sm:$0xf]
      %v1769 = vld [vmem:[%s11 + $0x7c] sm:$0xf]
      %v1770 = vld [vmem:[%s12] sm:$0x1]
      %v1772 = vlaneseq
      %v1773 = vshrl.u32 %v1772, 7
      %v1774 = vsub.s32 0, %v1773
      %v1775 = vrot.slane %v1770, %v1774
      %v1809 = vunpack.c.l.b16 %v1738
      %v1810 = vunpack.c.l.b16 %v1739
      %v1811 = vunpack.c.l.b16 %v1740
      %v1812 = vunpack.c.l.b16 %v1741
      %v1813 = vunpack.c.l.b16 %v1742
      %v1814 = vunpack.c.l.b16 %v1743
      %v1815 = vunpack.c.l.b16 %v1744
      %v1816 = vunpack.c.l.b16 %v1745
      %v1817 = vunpack.c.l.b16 %v1746
      %v1818 = vunpack.c.l.b16 %v1747
      %v1819 = vunpack.c.l.b16 %v1748
      %v1820 = vunpack.c.l.b16 %v1749
      %v1821 = vunpack.c.l.b16 %v1750
      %v1822 = vunpack.c.l.b16 %v1751
      %v1823 = vunpack.c.l.b16 %v1752
      %v1824 = vunpack.c.l.b16 %v1753
      %v1825 = vunpack.c.l.b16 %v1754
      %v1826 = vunpack.c.l.b16 %v1755
      %v1827 = vunpack.c.l.b16 %v1756
      %v1828 = vunpack.c.l.b16 %v1757
      %v1829 = vunpack.c.l.b16 %v1758
      %v1830 = vunpack.c.l.b16 %v1759
      %v1831 = vunpack.c.l.b16 %v1760
      %v1832 = vunpack.c.l.b16 %v1761
      %v1833 = vunpack.c.l.b16 %v1762
      %v1834 = vunpack.c.l.b16 %v1763
      %v1835 = vunpack.c.l.b16 %v1764
      %v1836 = vunpack.c.l.b16 %v1765
      %v1837 = vunpack.c.l.b16 %v1766
      %v1838 = vunpack.c.l.b16 %v1767
      %v1839 = vunpack.c.l.b16 %v1768
      %v1840 = vunpack.c.l.b16 %v1769
      %v1841 = vpack.c.b16 %v1810, %v1809
      %v1842 = vpack.c.b16 %v1812, %v1811
      %v1843 = vpack.c.b16 %v1814, %v1813
      %v1844 = vpack.c.b16 %v1816, %v1815
      %v1845 = vpack.c.b16 %v1818, %v1817
      %v1846 = vpack.c.b16 %v1820, %v1819
      %v1847 = vpack.c.b16 %v1822, %v1821
      %v1848 = vpack.c.b16 %v1824, %v1823
      %v1849 = vpack.c.b16 %v1826, %v1825
      %v1850 = vpack.c.b16 %v1828, %v1827
      %v1851 = vpack.c.b16 %v1830, %v1829
      %v1852 = vpack.c.b16 %v1832, %v1831
      %v1853 = vpack.c.b16 %v1834, %v1833
      %v1854 = vpack.c.b16 %v1836, %v1835
      %v1855 = vpack.c.b16 %v1838, %v1837
      %v1856 = vpack.c.b16 %v1840, %v1839
      %1873 = vmatprep.subr.bf16.mxu0 0
      %1874 = vmatpush1.bf16.msra.mxu0 %v1841
      %1875 = vmatprep.subr.bf16.mxu0 0
      %1876 = vmatpush1.bf16.msra.mxu0 %v1842
      %1877 = vmatprep.subr.bf16.mxu0 0
      %1878 = vmatpush1.bf16.msra.mxu0 %v1843
      %1879 = vmatprep.subr.bf16.mxu0 0
      %1880 = vmatpush1.bf16.msra.mxu0 %v1844
      %1881 = vmatprep.subr.bf16.mxu0 0
      %1882 = vmatpush1.bf16.msra.mxu0 %v1845
      %1883 = vmatprep.subr.bf16.mxu0 0
      %1884 = vmatpush1.bf16.msra.mxu0 %v1846
      %1885 = vmatprep.subr.bf16.mxu0 0
      %1886 = vmatpush1.bf16.msra.mxu0 %v1847
      %1887 = vmatprep.subr.bf16.mxu0 0
      %1888 = vmatpush1.bf16.msra.mxu0 %v1848
      %1889 = vmatprep.subr.bf16.mxu0 0
      %1890 = vmatpush1.bf16.msra.mxu0 %v1849
      %1891 = vmatprep.subr.bf16.mxu0 0
      %1892 = vmatpush1.bf16.msra.mxu0 %v1850
      %1893 = vmatprep.subr.bf16.mxu0 0
      %1894 = vmatpush1.bf16.msra.mxu0 %v1851
      %1895 = vmatprep.subr.bf16.mxu0 0
      %1896 = vmatpush1.bf16.msra.mxu0 %v1852
      %1897 = vmatprep.subr.bf16.mxu0 0
      %1898 = vmatpush1.bf16.msra.mxu0 %v1853
      %1899 = vmatprep.subr.bf16.mxu0 0
      %1900 = vmatpush1.bf16.msra.mxu0 %v1854
      %1901 = vmatprep.subr.bf16.mxu0 0
      %1902 = vmatpush1.bf16.msra.mxu0 %v1855
      %1903 = vmatprep.subr.bf16.mxu0 0
      %1904 = vmatpush1.bf16.msra.mxu0 %v1856
      %1905 = vmatprep.mubr.bf16.mxu0 %v1735
      %1906 = vmatmul.mubr.bf16.gmra.mrb[0].mxu0 %v1734
      %v1907 = vpop.f32.mrb[0].mxu0
      %v1908 = vadd.f32 %v1775, %v1907
      %v1909 = vpop.f32.mrb[0].mxu0
      %v1910 = vpop.f32.mrb[0].mxu0
      %v1911 = vadd.f32 %v1775, %v1910
      %v1912 = vpop.f32.mrb[0].mxu0
      %1913 = vmatprep.mubr.bf16.mxu0 %v1737
      %1914 = vmatmul.mubr.bf16.gmra.mrb[0].mxu0 %v1736
      %v1915 = vpop.f32.mrb[0].mxu0
      %v1916 = vadd.f32 %v1775, %v1915
      %v1917 = vpop.f32.mrb[0].mxu0
      %v1918 = vpop.f32.mrb[0].mxu0
      %v1919 = vadd.f32 %v1775, %v1918
      %v1920 = vpop.f32.mrb[0].mxu0
      %1921 = vdwg.mxu0
      %1922 = vst [vmem:[%s464] sm:$0xff] %v1908
      %1923 = vst [vmem:[%s464 + $0x8] sm:$0xff] %v1911
      %1924 = vst [vmem:[%s464 + $0x10] sm:$0xff] %v1916
      %1925 = vst [vmem:[%s464 + $0x18] sm:$0xff] %v1919
      %s1926 = smul.u32 4, %s24
      %p1927 = scmp.lt.s32.totalorder %s1926, 31
      %s1928 = scalar_select %p1927, %s1926, 31
      %s1929 = smul.addr %s1928, 8
      %s1930 = scalar_lea.vmem %s13, %s1929
      // Predicated region
      $region73: #{_generator_pallas.1} parent=71 // pred_check
        %p1931 = pneg %p325
      $region74: #{_generator_pallas.1} parent=71 // pred_check_branch
        %1933 = sbr.rel (%p1931) target = $region76
      $region75: #{_generator_pallas.1} parent=71 // pred_region
        %s1934 = smul.u32 4, %s24
      $region76: #{_generator_pallas.1} parent=71 // pred_fallthru
        _
    $region72: #{_generator_pallas.1} parent=5 // pred_fallthru
      _
    %p1935 = scmp.le.s32.totalorder 2, %s19
    // Predicated region
    $region77: #{_generator_pallas.1} parent=5 // pred_check
      %p1936 = pneg %p1935
    $region78: #{_generator_pallas.1} parent=5 // pred_check_branch
      %1938 = sbr.rel (%p1936) target = $region80
    $region79: #{_generator_pallas.1} parent=5 // pred_region
      %s1939 = ssub.s32 %s19, 2
      // Predicated region
      $region81: #{_generator_pallas.1} parent=79 // pred_check
        %p1940 = pneg %p331
      $region82: #{_generator_pallas.1} parent=79 // pred_check_branch
        %1942 = sbr.rel (%p1940) target = $region84
      $region83: #{_generator_pallas.1} parent=79 // pred_region
        %s1943 = smul.u32 4, %s25
        %p1944 = scmp.lt.s32.totalorder %s1943, 31
        %s1945 = scalar_select %p1944, %s1943, 31
        %s1946 = smul.addr %s1945, 8
        %s1947 = scalar_lea.vmem %s13, %s1946
      $region84: #{_generator_pallas.1} parent=79 // pred_fallthru
        _
    $region80: #{_generator_pallas.1} parent=5 // pred_fallthru
      _
  $region6: #{_generator_pallas.1} parent=0 // loop_footer
    %s23 = sadd.s32 1, %s19
  $region7: #{_generator_pallas.1} parent=0 // loop_footer_branch
    %18 = sbr.rel target = $region3
  $region8: #{_generator_pallas.1} parent=0 // loop_exit
    _

</llo_original>
